<compile_context>
chip_gen: v7x
topology: tpu7x:2x2x1
jax: 0.10.0
libtpu: 0.0.40
codegen_flags: <defaults>
</compile_context>

<pallas_src>
import math

import jax
import jax.numpy as jnp
from jax.experimental import pallas as pl
from jax.experimental.pallas import tpu as pltpu

NUM_HEADS = 4
LN_EPS = 1e-5
NEG_INF = -1e9  # finite mask bias (documented divergence from torch NaN on fully-masked rows)


def _round_up(x, m):
    return (x + m - 1) // m * m


def _layer_norm(x, g, b):
    mu = jnp.mean(x, axis=-1, keepdims=True)
    var = jnp.mean((x - mu) ** 2, axis=-1, keepdims=True)
    return (x - mu) * jax.lax.rsqrt(var + LN_EPS) * g + b


# --------------------------------------------------------------------------
# per-layer Pallas kernel
# --------------------------------------------------------------------------
def _make_layer_kernel(H, Dh, TQ, D, return_weights, compute_dtype):
    def kernel(x_ref, bias_ref,
               wq_ref, bq_ref, wkt_ref, bkt_ref, wv_ref, bv_ref,
               wo_ref, bo_ref, ln1g_ref, ln1b_ref,
               w1_ref, b1_ref, w2_ref, b2_ref, ln2g_ref, ln2b_ref,
               *tail):
        if return_weights:
            out_ref, attn_ref = tail[0], tail[1]
            k_sc, v_sc = tail[2], tail[3]
        else:
            out_ref, attn_ref = tail[0], None
            k_sc, v_sc = tail[1], tail[2]

        qi = pl.program_id(1)
        S = v_sc.shape[0]

        # ---- once per batch element (qi == 0): K^T and V over the full
        #      (padded) sequence, written straight into lane-dense scratch.
        @pl.when(qi == 0)
        def _():
            x_c = x_ref[...].astype(compute_dtype)                     # (S, D)
            # K^T = Wk^T @ x^T  -> (D, S), lane-dense on S (per-head rows are
            # a cheap sublane slice later).  One activation transpose / batch.
            kt = jnp.dot(wkt_ref[...], x_c.T,
                         preferred_element_type=jnp.float32) + bkt_ref[...]
            k_sc[...] = kt.astype(compute_dtype)
            # V = x @ Wv -> (S, D), packed & lane-dense (no Dh padding).
            v = jnp.dot(x_c, wv_ref[...],
                        preferred_element_type=jnp.float32) + bv_ref[...]
            v_sc[...] = v.astype(compute_dtype)

        # ---- per query tile ----
        q_start = pl.multiple_of(qi * TQ, TQ)
        x_q = x_ref[pl.ds(q_start, TQ), :]                             # (TQ, D) f32

        # Q projection: one full-depth / full-width MXU pass (scale folded
        # into wq/bq on the host).
        q_all = jnp.dot(x_q.astype(compute_dtype), wq_ref[...],
                        preferred_element_type=jnp.float32) + bq_ref[...]
        q_all = q_all.astype(compute_dtype)                            # (TQ, D)

        # key-padding bias broadcast hoisted out of the head loop
        bias_bc = jnp.broadcast_to(bias_ref[...], (TQ, S)).astype(jnp.float32)

        ctx_parts = []
        attn_acc = jnp.zeros((TQ, S), jnp.float32) if return_weights else None

        # Static unroll over heads (H is a small compile-time constant).
        for h in range(H):
            lo = h * Dh
            q_h = q_all[:, lo:lo + Dh]                                 # (TQ, Dh)
            k_h = k_sc[lo:lo + Dh, :]                                  # (Dh, S) sublane slice
            s = jnp.dot(q_h, k_h, preferred_element_type=jnp.float32)  # (TQ, S) f32
            s = s + bias_bc
            m = jnp.max(s, axis=-1, keepdims=True)
            e = jnp.exp(s - m)
            denom = jnp.sum(e, axis=-1, keepdims=True)
            p = e * pl.reciprocal(denom, approx=True)                  # EUP recip (ctx path)
            if return_weights:
                attn_acc = attn_acc + e * (1.0 / denom)                # exact for returned weights
            ctx_parts.append(jnp.dot(p.astype(compute_dtype),
                                     v_sc[:, lo:lo + Dh],
                                     preferred_element_type=jnp.float32))

        if return_weights:
            attn_ref[...] = attn_acc * (1.0 / H)   # averaged over heads (torch MHA)

        # one-time lane concat, then a single full-depth output projection
        ctx = jnp.concatenate(ctx_parts, axis=-1).astype(compute_dtype)  # (TQ, D)
        proj = jnp.dot(ctx, wo_ref[...], preferred_element_type=jnp.float32)

        # ---- residual + post-LayerNorm 1 ----
        y = x_q + proj + bo_ref[...]
        y = _layer_norm(y, ln1g_ref[...], ln1b_ref[...])

        # ---- feed-forward (ReLU) + residual + post-LayerNorm 2 ----
        hdn = jnp.dot(y.astype(compute_dtype), w1_ref[...],
                      preferred_element_type=jnp.float32) + b1_ref[...]
        hdn = jnp.maximum(hdn, 0.0)
        f = jnp.dot(hdn.astype(compute_dtype), w2_ref[...],
                    preferred_element_type=jnp.float32) + b2_ref[...]
        z = y + f
        out_ref[...] = _layer_norm(z, ln2g_ref[...], ln2b_ref[...])

    return kernel


def _run_layer(x_bsd, bias_b1s, wp, *, num_heads, q_tile, return_weights,
               compute_dtype):
    B, S, D = x_bsd.shape
    H = num_heads
    Dh = D // H
    F = wp['w1'].shape[-1]
    TQ = q_tile
    nq = S // TQ

    kernel = _make_layer_kernel(H, Dh, TQ, D, return_weights, compute_dtype)

    weight_order = ('wq', 'bq', 'wkt', 'bkt', 'wv', 'bv', 'wo', 'bo',
                    'ln1g', 'ln1b', 'w1', 'b1', 'w2', 'b2', 'ln2g', 'ln2b')
    weights = [wp[k] for k in weight_order]

    # whole-array, single-copy VMEM residency (no pipeline double-buffering)
    def resident():
        return pl.BlockSpec(memory_space=pltpu.MemorySpace.VMEM)

    in_specs = [
        pl.BlockSpec((None, S, D), lambda b, q: (b, 0, 0)),   # x: full sequence of batch b
        pl.BlockSpec((None, 1, S), lambda b, q: (b, 0, 0)),   # additive key-padding bias
    ] + [resident() for _ in weights]

    out_shape = [jax.ShapeDtypeStruct((B, S, D), jnp.float32)]
    out_specs = [pl.BlockSpec((None, TQ, D), lambda b, q: (b, q, 0))]
    if return_weights:
        out_shape.append(jax.ShapeDtypeStruct((B, S, S), jnp.float32))
        out_specs.append(pl.BlockSpec((None, TQ, S), lambda b, q: (b, q, 0)))

    # K^T / V slabs carried across the query-tile axis (filled at qi == 0)
    scratch_shapes = [pltpu.VMEM((D, S), compute_dtype),      # K^T (lane-dense on S)
                      pltpu.VMEM((S, D), compute_dtype)]      # V   (lane-dense on D)

    # VMEM budget: single-copy weights + double-buffered blocks + scratch
    # (incl. lane padding) + in-kernel temporaries (FFN hidden, scores, ...)
    lane = lambda n: _round_up(n, 128)
    cdb = jnp.dtype(compute_dtype).itemsize
    w_bytes = sum(int(w.size) * w.dtype.itemsize for w in weights)
    io_bytes = 2 * 4 * (S * D + lane(S) + TQ * D
                        + (TQ * lane(S) if return_weights else 0))
    scr_bytes = cdb * (D * lane(S) + S * lane(D))
    tmp_bytes = 4 * (S * D                      # x_c / x^T / K,V fill temps
                     + 3 * TQ * lane(S)         # s, p, attn_acc
                     + 4 * TQ * D               # q_all, ctx, proj, y/z
                     + 2 * TQ * F)              # FFN hidden (f32 + cast copy)
    est = w_bytes + io_bytes + scr_bytes + tmp_bytes
    try:
        cap = int(0.85 * pltpu.get_tpu_info().vmem_capacity_bytes)
    except Exception:
        cap = int(0.85 * (64 << 20))            # conservative v7x fallback
    vmem_limit = min(max(int(1.3 * est), 32 << 20), cap)

    grid_spec = pltpu.PrefetchScalarGridSpec(
        num_scalar_prefetch=0,
        grid=(B, nq),
        in_specs=in_specs,
        out_specs=tuple(out_specs),
        scratch_shapes=scratch_shapes,
    )

    result = pl.pallas_call(
        kernel,
        out_shape=tuple(out_shape),
        grid_spec=grid_spec,
        compiler_params=pltpu.CompilerParams(
            dimension_semantics=("parallel", "arbitrary"),
            vmem_limit_bytes=vmem_limit),
    )(x_bsd, bias_b1s, *weights)

    if return_weights:
        return result[0], result[1]
    out = result[0] if isinstance(result, (tuple, list)) else result
    return out, None


# --------------------------------------------------------------------------
# public wrapper (PyTorch layout / semantics)
# --------------------------------------------------------------------------
def _prep_params(p, num_heads, compute_dtype):
    """Fold the softmax scale into Wq/bq, pre-transpose Wk, cast matmul weights."""
    D = p['wq'].shape[0]
    Dh = D // num_heads
    scale = 1.0 / math.sqrt(Dh)
    return dict(
        wq=(p['wq'] * scale).astype(compute_dtype),
        bq=(p['bq'] * scale).astype(jnp.float32),
        wkt=p['wk'].T.astype(compute_dtype),                    # (D, D) rows = out features
        bkt=p['bk'].reshape(D, 1).astype(jnp.float32),
        wv=p['wv'].astype(compute_dtype),
        bv=p['bv'].astype(jnp.float32),
        wo=p['wo'].astype(compute_dtype),
        bo=p['bo'].astype(jnp.float32),
        ln1g=p['ln1g'].astype(jnp.float32), ln1b=p['ln1b'].astype(jnp.float32),
        w1=p['w1'].astype(compute_dtype), b1=p['b1'].astype(jnp.float32),
        w2=p['w2'].astype(compute_dtype), b2=p['b2'].astype(jnp.float32),
        ln2g=p['ln2g'].astype(jnp.float32), ln2b=p['ln2b'].astype(jnp.float32),
    )


def transformer_encoder(x_sbd, key_padding_mask, layer_params, *,
                        num_heads=NUM_HEADS, q_tile=None,
                        return_weights=True, compute_dtype=jnp.bfloat16):
    """Mirrors TransformerEncoder.forward.

    x_sbd:             (S, B, D) float32 (PyTorch seq-first convention)
    key_padding_mask:  (B, S) bool, True = padded key position
    returns (output (S, B, D), weights (L, B, S, S) or None)
    compute_dtype=jnp.float32 restores full f32 matmul fidelity if needed.
    """
    S, B, D = x_sbd.shape
    if len(layer_params) == 0:
        return x_sbd.astype(jnp.float32), None
    assert D % num_heads == 0, "d_model must be divisible by num_heads"

    if q_tile is None:
        q_tile = 128 if S >= 128 else _round_up(S, 8)
    TQ = int(q_tile)
    assert TQ % 8 == 0, "query tile must be a multiple of 8 (sublanes)"
    S_pad = _round_up(max(S, TQ), TQ)

    x = jnp.transpose(x_sbd, (1, 0, 2)).astype(jnp.float32)        # (B, S, D)
    mask = key_padding_mask.astype(jnp.bool_)
    if S_pad != S:
        x = jnp.pad(x, ((0, 0), (0, S_pad - S), (0, 0)))
        mask = jnp.pad(mask, ((0, 0), (0, S_pad - S)), constant_values=True)
    bias = (mask.astype(jnp.float32) * NEG_INF)[:, None, :]        # (B, 1, S_pad)

    attns = []
    for p in layer_params:
        wp = _prep_params(p, num_heads, compute_dtype)
        x, a = _run_layer(x, bias, wp, num_heads=num_heads, q_tile=TQ,
                          return_weights=return_weights,
                          compute_dtype=compute_dtype)
        if return_weights:
            attns.append(a[:, :S, :S])

    out = jnp.transpose(x[:, :S, :], (1, 0, 2))                    # (S, B, D)
    weights = jnp.stack(attns, axis=0) if return_weights else None
    return out, weights


# --------------------------------------------------------------------------
# pure-JAX reference (for validation) and parameter init
# --------------------------------------------------------------------------
def _reference_forward(x_sbd, key_padding_mask, layer_params, *,
                       num_heads, compute_dtype=jnp.float32):
    cd = compute_dtype

    def mm(a, w):
        return jnp.einsum('...ij,jk->...ik', a.astype(cd), w.astype(cd),
                          preferred_element_type=jnp.float32)

    x = jnp.transpose(x_sbd, (1, 0, 2)).astype(jnp.float32)
    B, S, D = x.shape
    H = num_heads
    Dh = D // H
    scale = 1.0 / math.sqrt(Dh)
    bias = key_padding_mask.astype(jnp.float32)[:, None, None, :] * NEG_INF
    attns = []
    for p in layer_params:
        qf = mm(x, p['wq']) + p['bq']
        kf = mm(x, p['wk']) + p['bk']
        vf = mm(x, p['wv']) + p['bv']
        q = (qf * scale).astype(cd).reshape(B, S, H, Dh).transpose(0, 2, 1, 3)
        k = kf.astype(cd).reshape(B, S, H, Dh).transpose(0, 2, 1, 3)
        v = vf.astype(cd).reshape(B, S, H, Dh).transpose(0, 2, 1, 3)
        s = jnp.einsum('bhqd,bhkd->bhqk', q, k,
                       preferred_element_type=jnp.float32) + bias
        pr = jax.nn.softmax(s, axis=-1)
        attns.append(jnp.mean(pr, axis=1))
        ctx = jnp.einsum('bhqk,bhkd->bhqd', pr.astype(cd), v,
                         preferred_element_type=jnp.float32)
        ctx = ctx.transpose(0, 2, 1, 3).reshape(B, S, D)
        y = _layer_norm(x + mm(ctx, p['wo']) + p['bo'], p['ln1g'], p['ln1b'])
        hdn = jnp.maximum(mm(y, p['w1']) + p['b1'], 0.0)
        x = _layer_norm(y + mm(hdn, p['w2']) + p['b2'], p['ln2g'], p['ln2b'])
    out = jnp.transpose(x, (1, 0, 2))
    return out, (jnp.stack(attns, axis=0) if layer_params else None)


def init_layer_params(key, d_model, dim_ff):
    # weights stored in (in, out) layout (transpose of torch.nn.Linear.weight)
    ks = jax.random.split(key, 8)
    s = 0.1
    return dict(
        wq=s * jax.random.normal(ks[0], (d_model, d_model), jnp.float32),
        bq=jnp.zeros((1, d_model), jnp.float32),
        wk=s * jax.random.normal(ks[1], (d_model, d_model), jnp.float32),
        bk=jnp.zeros((1, d_model), jnp.float32),
        wv=s * jax.random.normal(ks[2], (d_model, d_model), jnp.float32),
        bv=jnp.zeros((1, d_model), jnp.float32),
        wo=s * jax.random.normal(ks[3], (d_model, d_model), jnp.float32),
        bo=jnp.zeros((1, d_model), jnp.float32),
        ln1g=jnp.ones((1, d_model), jnp.float32),
        ln1b=jnp.zeros((1, d_model), jnp.float32),
        w1=s * jax.random.normal(ks[4], (d_model, dim_ff), jnp.float32),
        b1=jnp.zeros((1, dim_ff), jnp.float32),
        w2=s * jax.random.normal(ks[5], (dim_ff, d_model), jnp.float32),
        b2=jnp.zeros((1, d_model), jnp.float32),
        ln2g=jnp.ones((1, d_model), jnp.float32),
        ln2b=jnp.zeros((1, d_model), jnp.float32),
    )


if __name__ == "__main__":
    # lane-dense toy config: D a multiple of 128, small S/B, multi-tile grid
    SEQ, BATCH, D_MODEL, DIM_FF, NUM_LAYERS = 16, 2, 128, 256, 2

    key = jax.random.PRNGKey(0)
    k_x, k_p = jax.random.split(key)

    x = jax.random.normal(k_x, (SEQ, BATCH, D_MODEL), jnp.float32)   # (S, B, D)
    mask = jnp.zeros((BATCH, SEQ), jnp.bool_).at[1, -4:].set(True)   # pad last 4 keys of batch 1

    layer_keys = jax.random.split(k_p, NUM_LAYERS)
    params = [init_layer_params(layer_keys[i], D_MODEL, DIM_FF)
              for i in range(NUM_LAYERS)]

    # q_tile=8 -> grid = (B=2, nq=2): exercises pipelining + the K/V scratch carry
    out, weights = transformer_encoder(x, mask, params, num_heads=NUM_HEADS,
                                       q_tile=8)
    out = jax.block_until_ready(out)
    weights = jax.block_until_ready(weights)

    assert out.shape == (SEQ, BATCH, D_MODEL)
    assert weights.shape == (NUM_LAYERS, BATCH, SEQ, SEQ)
    assert bool(jnp.all(jnp.isfinite(out)))
    # averaged attention rows are probability distributions (exact recip on this path)
    assert bool(jnp.allclose(weights.sum(-1), 1.0, atol=2e-2))
    # masked keys of batch 1 receive ~zero attention
    assert float(jnp.max(weights[:, 1, :, -4:])) < 1e-6

    # validate against a pure-JAX reference using the same bf16 MXU casts
    ref_out, ref_w = _reference_forward(x, mask, params, num_heads=NUM_HEADS,
                                        compute_dtype=jnp.bfloat16)
    err_out = float(jnp.max(jnp.abs(out - ref_out)))
    err_w = float(jnp.max(jnp.abs(weights - ref_w)))
    assert err_out < 3e-2, f"output mismatch vs reference: {err_out}"
    assert err_w < 1e-2, f"attention-weight mismatch vs reference: {err_w}"

    # exercise the no-weights fast path (skips the (B,S,S) HBM writeback)
    out_nw, w_nw = transformer_encoder(x, mask, params, num_heads=NUM_HEADS,
                                       q_tile=8, return_weights=False)
    out_nw = jax.block_until_ready(out_nw)
    assert w_nw is None
    assert bool(jnp.allclose(out_nw, out, atol=1e-4))

    print("KERNEL_OK")
</pallas_src>

<mosaic_0001>
module attributes {stable_mosaic.version = 11 : i64} {
  func.func @kernel(%arg0: i32, %arg1: i32, %arg2: memref<1x16x128xf32, #tpu.memory_space<vmem>>, %arg3: memref<1x1x16xf32, #tpu.memory_space<vmem>>, %arg4: memref<128x128xbf16, #tpu.memory_space<vmem>>, %arg5: memref<1x128xf32, #tpu.memory_space<vmem>>, %arg6: memref<128x128xbf16, #tpu.memory_space<vmem>>, %arg7: memref<128x1xf32, #tpu.memory_space<vmem>>, %arg8: memref<128x128xbf16, #tpu.memory_space<vmem>>, %arg9: memref<1x128xf32, #tpu.memory_space<vmem>>, %arg10: memref<128x128xbf16, #tpu.memory_space<vmem>>, %arg11: memref<1x128xf32, #tpu.memory_space<vmem>>, %arg12: memref<1x128xf32, #tpu.memory_space<vmem>>, %arg13: memref<1x128xf32, #tpu.memory_space<vmem>>, %arg14: memref<128x256xbf16, #tpu.memory_space<vmem>>, %arg15: memref<1x256xf32, #tpu.memory_space<vmem>>, %arg16: memref<256x128xbf16, #tpu.memory_space<vmem>>, %arg17: memref<1x128xf32, #tpu.memory_space<vmem>>, %arg18: memref<1x128xf32, #tpu.memory_space<vmem>>, %arg19: memref<1x128xf32, #tpu.memory_space<vmem>>, %arg20: memref<1x8x128xf32, #tpu.memory_space<vmem>>, %arg21: memref<1x8x16xf32, #tpu.memory_space<vmem>>, %arg22: memref<128x16xbf16, #tpu.memory_space<vmem>>, %arg23: memref<16x128xbf16, #tpu.memory_space<vmem>>) attributes {dimension_semantics = [#tpu.dimension_semantics<parallel>, #tpu.dimension_semantics<arbitrary>], iteration_bounds = array<i64: 2, 2>, scalar_prefetch = 0 : i64, scratch_operands = 2 : i64, tpu.core_type = #tpu.core_type<tc>, window_params = [{transform_indices = @transform_0, window_bounds = array<i64: 1, 16, 128>}, {transform_indices = @transform_1, window_bounds = array<i64: 1, 1, 16>}, {pipeline_mode = #tpu.pipeline_mode<synchronous>, transform_indices = @transform_2, window_bounds = array<i64: 128, 128>}, {pipeline_mode = #tpu.pipeline_mode<synchronous>, transform_indices = @transform_3, window_bounds = array<i64: 1, 128>}, {pipeline_mode = #tpu.pipeline_mode<synchronous>, transform_indices = @transform_4, window_bounds = array<i64: 128, 128>}, {pipeline_mode = #tpu.pipeline_mode<synchronous>, transform_indices = @transform_5, window_bounds = array<i64: 128, 1>}, {pipeline_mode = #tpu.pipeline_mode<synchronous>, transform_indices = @transform_6, window_bounds = array<i64: 128, 128>}, {pipeline_mode = #tpu.pipeline_mode<synchronous>, transform_indices = @transform_7, window_bounds = array<i64: 1, 128>}, {pipeline_mode = #tpu.pipeline_mode<synchronous>, transform_indices = @transform_8, window_bounds = array<i64: 128, 128>}, {pipeline_mode = #tpu.pipeline_mode<synchronous>, transform_indices = @transform_9, window_bounds = array<i64: 1, 128>}, {pipeline_mode = #tpu.pipeline_mode<synchronous>, transform_indices = @transform_10, window_bounds = array<i64: 1, 128>}, {pipeline_mode = #tpu.pipeline_mode<synchronous>, transform_indices = @transform_11, window_bounds = array<i64: 1, 128>}, {pipeline_mode = #tpu.pipeline_mode<synchronous>, transform_indices = @transform_12, window_bounds = array<i64: 128, 256>}, {pipeline_mode = #tpu.pipeline_mode<synchronous>, transform_indices = @transform_13, window_bounds = array<i64: 1, 256>}, {pipeline_mode = #tpu.pipeline_mode<synchronous>, transform_indices = @transform_14, window_bounds = array<i64: 256, 128>}, {pipeline_mode = #tpu.pipeline_mode<synchronous>, transform_indices = @transform_15, window_bounds = array<i64: 1, 128>}, {pipeline_mode = #tpu.pipeline_mode<synchronous>, transform_indices = @transform_16, window_bounds = array<i64: 1, 128>}, {pipeline_mode = #tpu.pipeline_mode<synchronous>, transform_indices = @transform_17, window_bounds = array<i64: 1, 128>}, {transform_indices = @transform_18, window_bounds = array<i64: 1, 8, 128>}, {transform_indices = @transform_19, window_bounds = array<i64: 1, 8, 16>}]} {
    %c0_i32 = arith.constant 0 : i32
    %0 = arith.cmpi eq, %arg1, %c0_i32 : i32
    %1 = arith.extui %0 : i1 to i32
    %c0_i32_0 = arith.constant 0 : i32
    %2 = arith.cmpi ne, %1, %c0_i32_0 : i32
    scf.if %2 {
      %c0_84 = arith.constant 0 : index
      %c0_85 = arith.constant 0 : index
      %c0_86 = arith.constant 0 : index
      %187 = vector.load %arg2[%c0_84, %c0_85, %c0_86] : memref<1x16x128xf32, #tpu.memory_space<vmem>>, vector<1x16x128xf32>
      %188 = vector.shape_cast %187 : vector<1x16x128xf32> to vector<16x128xf32>
      %189 = arith.truncf %188 : vector<16x128xf32> to vector<16x128xbf16>
      %c0_87 = arith.constant 0 : index
      %c0_88 = arith.constant 0 : index
      %190 = vector.load %arg6[%c0_87, %c0_88] : memref<128x128xbf16, #tpu.memory_space<vmem>>, vector<128x128xbf16>
      %191 = tpu.transpose %189, [1, 0] : vector<16x128xbf16> -> vector<128x16xbf16>
      %cst_89 = arith.constant dense<0.000000e+00> : vector<128x16xf32>
      %192 = tpu.matmul %190, %191, %cst_89 {dimension_numbers = #tpu.dot_dimension_numbers<[1], [0], [0], [1], [0, 0, 1, 1], [], []>} : vector<128x128xbf16>, vector<128x16xbf16>, vector<128x16xf32> -> vector<128x16xf32>
      %c0_90 = arith.constant 0 : index
      %c0_91 = arith.constant 0 : index
      %193 = vector.load %arg7[%c0_90, %c0_91] : memref<128x1xf32, #tpu.memory_space<vmem>>, vector<128x1xf32>
      %194 = vector.broadcast %193 : vector<128x1xf32> to vector<128x16xf32>
      %195 = arith.addf %192, %194 : vector<128x16xf32>
      %196 = arith.truncf %195 : vector<128x16xf32> to vector<128x16xbf16>
      %c0_92 = arith.constant 0 : index
      %c0_93 = arith.constant 0 : index
      %197 = vector.load %arg22[%c0_92, %c0_93] : memref<128x16xbf16, #tpu.memory_space<vmem>>, vector<128x16xbf16>
      tpu.vector_store %arg22[%c0_92, %c0_93], %196 {strides = array<i32>} : memref<128x16xbf16, #tpu.memory_space<vmem>>, vector<128x16xbf16>,
      %c0_94 = arith.constant 0 : index
      %c0_95 = arith.constant 0 : index
      %198 = vector.load %arg8[%c0_94, %c0_95] : memref<128x128xbf16, #tpu.memory_space<vmem>>, vector<128x128xbf16>
      %cst_96 = arith.constant dense<0.000000e+00> : vector<16x128xf32>
      %199 = tpu.matmul %189, %198, %cst_96 {dimension_numbers = #tpu.dot_dimension_numbers<[1], [0], [0], [1], [0, 0, 1, 1], [], []>} : vector<16x128xbf16>, vector<128x128xbf16>, vector<16x128xf32> -> vector<16x128xf32>
      %c0_97 = arith.constant 0 : index
      %c0_98 = arith.constant 0 : index
      %200 = vector.load %arg9[%c0_97, %c0_98] : memref<1x128xf32, #tpu.memory_space<vmem>>, vector<1x128xf32>
      %201 = vector.broadcast %200 : vector<1x128xf32> to vector<16x128xf32>
      %202 = arith.addf %199, %201 : vector<16x128xf32>
      %203 = arith.truncf %202 : vector<16x128xf32> to vector<16x128xbf16>
      %c0_99 = arith.constant 0 : index
      %c0_100 = arith.constant 0 : index
      %204 = vector.load %arg23[%c0_99, %c0_100] : memref<16x128xbf16, #tpu.memory_space<vmem>>, vector<16x128xbf16>
      tpu.vector_store %arg23[%c0_99, %c0_100], %203 {strides = array<i32>} : memref<16x128xbf16, #tpu.memory_space<vmem>>, vector<16x128xbf16>,
    } else {
    }
    %c8_i32 = arith.constant 8 : i32
    %3 = arith.muli %arg1, %c8_i32 : i32
    %4 = tpu.assume_multiple %3, 8 : i32
    %c0 = arith.constant 0 : index
    %5 = arith.index_cast %4 : i32 to index
    %c0_1 = arith.constant 0 : index
    %6 = vector.load %arg2[%c0, %5, %c0_1] : memref<1x16x128xf32, #tpu.memory_space<vmem>>, vector<1x8x128xf32>
    %7 = vector.shape_cast %6 : vector<1x8x128xf32> to vector<8x128xf32>
    %8 = arith.truncf %7 : vector<8x128xf32> to vector<8x128xbf16>
    %c0_2 = arith.constant 0 : index
    %c0_3 = arith.constant 0 : index
    %9 = vector.load %arg4[%c0_2, %c0_3] : memref<128x128xbf16, #tpu.memory_space<vmem>>, vector<128x128xbf16>
    %cst = arith.constant dense<0.000000e+00> : vector<8x128xf32>
    %10 = tpu.matmul %8, %9, %cst {dimension_numbers = #tpu.dot_dimension_numbers<[1], [0], [0], [1], [0, 0, 1, 1], [], []>} : vector<8x128xbf16>, vector<128x128xbf16>, vector<8x128xf32> -> vector<8x128xf32>
    %c0_4 = arith.constant 0 : index
    %c0_5 = arith.constant 0 : index
    %11 = vector.load %arg5[%c0_4, %c0_5] : memref<1x128xf32, #tpu.memory_space<vmem>>, vector<1x128xf32>
    %12 = vector.broadcast %11 : vector<1x128xf32> to vector<8x128xf32>
    %13 = arith.addf %10, %12 : vector<8x128xf32>
    %14 = arith.truncf %13 : vector<8x128xf32> to vector<8x128xbf16>
    %c0_6 = arith.constant 0 : index
    %c0_7 = arith.constant 0 : index
    %c0_8 = arith.constant 0 : index
    %15 = vector.load %arg3[%c0_6, %c0_7, %c0_8] : memref<1x1x16xf32, #tpu.memory_space<vmem>>, vector<1x1x16xf32>
    %16 = vector.shape_cast %15 : vector<1x1x16xf32> to vector<1x16xf32>
    %17 = vector.shape_cast %16 : vector<1x16xf32> to vector<1x16xf32>
    %18 = vector.broadcast %17 : vector<1x16xf32> to vector<8x16xf32>
    %cst_9 = arith.constant 0.000000e+00 : f32
    %19 = vector.broadcast %cst_9 : f32 to vector<8x16xf32>
    %20 = vector.extract_strided_slice %14 {offsets = [0, 0], sizes = [8, 32], strides = [1, 1]} : vector<8x128xbf16> to vector<8x32xbf16>
    %c0_10 = arith.constant 0 : index
    %c0_11 = arith.constant 0 : index
    %21 = vector.load %arg22[%c0_10, %c0_11] : memref<128x16xbf16, #tpu.memory_space<vmem>>, vector<32x16xbf16>
    %cst_12 = arith.constant dense<0.000000e+00> : vector<8x16xf32>
    %22 = tpu.matmul %20, %21, %cst_12 {dimension_numbers = #tpu.dot_dimension_numbers<[1], [0], [0], [1], [0, 0, 1, 1], [], []>} : vector<8x32xbf16>, vector<32x16xbf16>, vector<8x16xf32> -> vector<8x16xf32>
    %23 = arith.addf %22, %18 : vector<8x16xf32>
    %cst_13 = arith.constant dense<0xFF800000> : vector<8xf32>
    %24 = vector.multi_reduction <maximumf>, %23, %cst_13 [1] : vector<8x16xf32> to vector<8xf32>
    %25 = vector.shape_cast %24 : vector<8xf32> to vector<8x1xf32>
    %26 = vector.broadcast %25 : vector<8x1xf32> to vector<8x16xf32>
    %27 = arith.subf %23, %26 : vector<8x16xf32>
    %28 = math.exp %27 : vector<8x16xf32>
    %cst_14 = arith.constant dense<0.000000e+00> : vector<8xf32>
    %29 = vector.multi_reduction <add>, %28, %cst_14 [1] : vector<8x16xf32> to vector<8xf32>
    %30 = vector.shape_cast %29 : vector<8xf32> to vector<8x1xf32>
    %31 = tpu.reciprocal %30 {approx = true} : vector<8x1xf32> -> vector<8x1xf32>
    %32 = vector.broadcast %31 : vector<8x1xf32> to vector<8x16xf32>
    %33 = arith.mulf %28, %32 : vector<8x16xf32>
    %cst_15 = arith.constant 1.000000e+00 : f32
    %34 = vector.broadcast %cst_15 : f32 to vector<8x1xf32>
    %35 = arith.divf %34, %30 : vector<8x1xf32>
    %36 = vector.broadcast %35 : vector<8x1xf32> to vector<8x16xf32>
    %37 = arith.mulf %28, %36 : vector<8x16xf32>
    %38 = arith.addf %19, %37 : vector<8x16xf32>
    %39 = arith.truncf %33 : vector<8x16xf32> to vector<8x16xbf16>
    %c0_16 = arith.constant 0 : index
    %c0_17 = arith.constant 0 : index
    %40 = vector.load %arg23[%c0_16, %c0_17] : memref<16x128xbf16, #tpu.memory_space<vmem>>, vector<16x32xbf16>
    %cst_18 = arith.constant dense<0.000000e+00> : vector<8x32xf32>
    %41 = tpu.matmul %39, %40, %cst_18 {dimension_numbers = #tpu.dot_dimension_numbers<[1], [0], [0], [1], [0, 0, 1, 1], [], []>} : vector<8x16xbf16>, vector<16x32xbf16>, vector<8x32xf32> -> vector<8x32xf32>
    %42 = vector.extract_strided_slice %14 {offsets = [0, 32], sizes = [8, 32], strides = [1, 1]} : vector<8x128xbf16> to vector<8x32xbf16>
    %c32 = arith.constant 32 : index
    %c0_19 = arith.constant 0 : index
    %43 = vector.load %arg22[%c32, %c0_19] : memref<128x16xbf16, #tpu.memory_space<vmem>>, vector<32x16xbf16>
    %cst_20 = arith.constant dense<0.000000e+00> : vector<8x16xf32>
    %44 = tpu.matmul %42, %43, %cst_20 {dimension_numbers = #tpu.dot_dimension_numbers<[1], [0], [0], [1], [0, 0, 1, 1], [], []>} : vector<8x32xbf16>, vector<32x16xbf16>, vector<8x16xf32> -> vector<8x16xf32>
    %45 = arith.addf %44, %18 : vector<8x16xf32>
    %cst_21 = arith.constant dense<0xFF800000> : vector<8xf32>
    %46 = vector.multi_reduction <maximumf>, %45, %cst_21 [1] : vector<8x16xf32> to vector<8xf32>
    %47 = vector.shape_cast %46 : vector<8xf32> to vector<8x1xf32>
    %48 = vector.broadcast %47 : vector<8x1xf32> to vector<8x16xf32>
    %49 = arith.subf %45, %48 : vector<8x16xf32>
    %50 = math.exp %49 : vector<8x16xf32>
    %cst_22 = arith.constant dense<0.000000e+00> : vector<8xf32>
    %51 = vector.multi_reduction <add>, %50, %cst_22 [1] : vector<8x16xf32> to vector<8xf32>
    %52 = vector.shape_cast %51 : vector<8xf32> to vector<8x1xf32>
    %53 = tpu.reciprocal %52 {approx = true} : vector<8x1xf32> -> vector<8x1xf32>
    %54 = vector.broadcast %53 : vector<8x1xf32> to vector<8x16xf32>
    %55 = arith.mulf %50, %54 : vector<8x16xf32>
    %cst_23 = arith.constant 1.000000e+00 : f32
    %56 = vector.broadcast %cst_23 : f32 to vector<8x1xf32>
    %57 = arith.divf %56, %52 : vector<8x1xf32>
    %58 = vector.broadcast %57 : vector<8x1xf32> to vector<8x16xf32>
    %59 = arith.mulf %50, %58 : vector<8x16xf32>
    %60 = arith.addf %38, %59 : vector<8x16xf32>
    %61 = arith.truncf %55 : vector<8x16xf32> to vector<8x16xbf16>
    %c0_24 = arith.constant 0 : index
    %c32_25 = arith.constant 32 : index
    %62 = vector.load %arg23[%c0_24, %c32_25] : memref<16x128xbf16, #tpu.memory_space<vmem>>, vector<16x32xbf16>
    %cst_26 = arith.constant dense<0.000000e+00> : vector<8x32xf32>
    %63 = tpu.matmul %61, %62, %cst_26 {dimension_numbers = #tpu.dot_dimension_numbers<[1], [0], [0], [1], [0, 0, 1, 1], [], []>} : vector<8x16xbf16>, vector<16x32xbf16>, vector<8x32xf32> -> vector<8x32xf32>
    %64 = vector.extract_strided_slice %14 {offsets = [0, 64], sizes = [8, 32], strides = [1, 1]} : vector<8x128xbf16> to vector<8x32xbf16>
    %c64 = arith.constant 64 : index
    %c0_27 = arith.constant 0 : index
    %65 = vector.load %arg22[%c64, %c0_27] : memref<128x16xbf16, #tpu.memory_space<vmem>>, vector<32x16xbf16>
    %cst_28 = arith.constant dense<0.000000e+00> : vector<8x16xf32>
    %66 = tpu.matmul %64, %65, %cst_28 {dimension_numbers = #tpu.dot_dimension_numbers<[1], [0], [0], [1], [0, 0, 1, 1], [], []>} : vector<8x32xbf16>, vector<32x16xbf16>, vector<8x16xf32> -> vector<8x16xf32>
    %67 = arith.addf %66, %18 : vector<8x16xf32>
    %cst_29 = arith.constant dense<0xFF800000> : vector<8xf32>
    %68 = vector.multi_reduction <maximumf>, %67, %cst_29 [1] : vector<8x16xf32> to vector<8xf32>
    %69 = vector.shape_cast %68 : vector<8xf32> to vector<8x1xf32>
    %70 = vector.broadcast %69 : vector<8x1xf32> to vector<8x16xf32>
    %71 = arith.subf %67, %70 : vector<8x16xf32>
    %72 = math.exp %71 : vector<8x16xf32>
    %cst_30 = arith.constant dense<0.000000e+00> : vector<8xf32>
    %73 = vector.multi_reduction <add>, %72, %cst_30 [1] : vector<8x16xf32> to vector<8xf32>
    %74 = vector.shape_cast %73 : vector<8xf32> to vector<8x1xf32>
    %75 = tpu.reciprocal %74 {approx = true} : vector<8x1xf32> -> vector<8x1xf32>
    %76 = vector.broadcast %75 : vector<8x1xf32> to vector<8x16xf32>
    %77 = arith.mulf %72, %76 : vector<8x16xf32>
    %cst_31 = arith.constant 1.000000e+00 : f32
    %78 = vector.broadcast %cst_31 : f32 to vector<8x1xf32>
    %79 = arith.divf %78, %74 : vector<8x1xf32>
    %80 = vector.broadcast %79 : vector<8x1xf32> to vector<8x16xf32>
    %81 = arith.mulf %72, %80 : vector<8x16xf32>
    %82 = arith.addf %60, %81 : vector<8x16xf32>
    %83 = arith.truncf %77 : vector<8x16xf32> to vector<8x16xbf16>
    %c0_32 = arith.constant 0 : index
    %c64_33 = arith.constant 64 : index
    %84 = vector.load %arg23[%c0_32, %c64_33] : memref<16x128xbf16, #tpu.memory_space<vmem>>, vector<16x32xbf16>
    %cst_34 = arith.constant dense<0.000000e+00> : vector<8x32xf32>
    %85 = tpu.matmul %83, %84, %cst_34 {dimension_numbers = #tpu.dot_dimension_numbers<[1], [0], [0], [1], [0, 0, 1, 1], [], []>} : vector<8x16xbf16>, vector<16x32xbf16>, vector<8x32xf32> -> vector<8x32xf32>
    %86 = vector.extract_strided_slice %14 {offsets = [0, 96], sizes = [8, 32], strides = [1, 1]} : vector<8x128xbf16> to vector<8x32xbf16>
    %c96 = arith.constant 96 : index
    %c0_35 = arith.constant 0 : index
    %87 = vector.load %arg22[%c96, %c0_35] : memref<128x16xbf16, #tpu.memory_space<vmem>>, vector<32x16xbf16>
    %cst_36 = arith.constant dense<0.000000e+00> : vector<8x16xf32>
    %88 = tpu.matmul %86, %87, %cst_36 {dimension_numbers = #tpu.dot_dimension_numbers<[1], [0], [0], [1], [0, 0, 1, 1], [], []>} : vector<8x32xbf16>, vector<32x16xbf16>, vector<8x16xf32> -> vector<8x16xf32>
    %89 = arith.addf %88, %18 : vector<8x16xf32>
    %cst_37 = arith.constant dense<0xFF800000> : vector<8xf32>
    %90 = vector.multi_reduction <maximumf>, %89, %cst_37 [1] : vector<8x16xf32> to vector<8xf32>
    %91 = vector.shape_cast %90 : vector<8xf32> to vector<8x1xf32>
    %92 = vector.broadcast %91 : vector<8x1xf32> to vector<8x16xf32>
    %93 = arith.subf %89, %92 : vector<8x16xf32>
    %94 = math.exp %93 : vector<8x16xf32>
    %cst_38 = arith.constant dense<0.000000e+00> : vector<8xf32>
    %95 = vector.multi_reduction <add>, %94, %cst_38 [1] : vector<8x16xf32> to vector<8xf32>
    %96 = vector.shape_cast %95 : vector<8xf32> to vector<8x1xf32>
    %97 = tpu.reciprocal %96 {approx = true} : vector<8x1xf32> -> vector<8x1xf32>
    %98 = vector.broadcast %97 : vector<8x1xf32> to vector<8x16xf32>
    %99 = arith.mulf %94, %98 : vector<8x16xf32>
    %cst_39 = arith.constant 1.000000e+00 : f32
    %100 = vector.broadcast %cst_39 : f32 to vector<8x1xf32>
    %101 = arith.divf %100, %96 : vector<8x1xf32>
    %102 = vector.broadcast %101 : vector<8x1xf32> to vector<8x16xf32>
    %103 = arith.mulf %94, %102 : vector<8x16xf32>
    %104 = arith.addf %82, %103 : vector<8x16xf32>
    %105 = arith.truncf %99 : vector<8x16xf32> to vector<8x16xbf16>
    %c0_40 = arith.constant 0 : index
    %c96_41 = arith.constant 96 : index
    %106 = vector.load %arg23[%c0_40, %c96_41] : memref<16x128xbf16, #tpu.memory_space<vmem>>, vector<16x32xbf16>
    %cst_42 = arith.constant dense<0.000000e+00> : vector<8x32xf32>
    %107 = tpu.matmul %105, %106, %cst_42 {dimension_numbers = #tpu.dot_dimension_numbers<[1], [0], [0], [1], [0, 0, 1, 1], [], []>} : vector<8x16xbf16>, vector<16x32xbf16>, vector<8x32xf32> -> vector<8x32xf32>
    %cst_43 = arith.constant 2.500000e-01 : f32
    %108 = vector.broadcast %cst_43 : f32 to vector<8x16xf32>
    %109 = arith.mulf %104, %108 : vector<8x16xf32>
    %c0_44 = arith.constant 0 : index
    %c0_45 = arith.constant 0 : index
    %c0_46 = arith.constant 0 : index
    %110 = vector.load %arg21[%c0_44, %c0_45, %c0_46] : memref<1x8x16xf32, #tpu.memory_space<vmem>>, vector<1x8x16xf32>
    %111 = vector.shape_cast %110 : vector<1x8x16xf32> to vector<8x16xf32>
    %112 = vector.shape_cast %109 : vector<8x16xf32> to vector<1x8x16xf32>
    tpu.vector_store %arg21[%c0_44, %c0_45, %c0_46], %112 {strides = array<i32>} : memref<1x8x16xf32, #tpu.memory_space<vmem>>, vector<1x8x16xf32>,
    %113 = tpu.concatenate %41, %63, %85, %107 in 1 : vector<8x32xf32>, vector<8x32xf32>, vector<8x32xf32>, vector<8x32xf32> -> vector<8x128xf32>
    %114 = arith.truncf %113 : vector<8x128xf32> to vector<8x128xbf16>
    %c0_47 = arith.constant 0 : index
    %c0_48 = arith.constant 0 : index
    %115 = vector.load %arg10[%c0_47, %c0_48] : memref<128x128xbf16, #tpu.memory_space<vmem>>, vector<128x128xbf16>
    %cst_49 = arith.constant dense<0.000000e+00> : vector<8x128xf32>
    %116 = tpu.matmul %114, %115, %cst_49 {dimension_numbers = #tpu.dot_dimension_numbers<[1], [0], [0], [1], [0, 0, 1, 1], [], []>} : vector<8x128xbf16>, vector<128x128xbf16>, vector<8x128xf32> -> vector<8x128xf32>
    %117 = arith.addf %7, %116 : vector<8x128xf32>
    %c0_50 = arith.constant 0 : index
    %c0_51 = arith.constant 0 : index
    %118 = vector.load %arg11[%c0_50, %c0_51] : memref<1x128xf32, #tpu.memory_space<vmem>>, vector<1x128xf32>
    %119 = vector.broadcast %118 : vector<1x128xf32> to vector<8x128xf32>
    %120 = arith.addf %117, %119 : vector<8x128xf32>
    %c0_52 = arith.constant 0 : index
    %c0_53 = arith.constant 0 : index
    %121 = vector.load %arg12[%c0_52, %c0_53] : memref<1x128xf32, #tpu.memory_space<vmem>>, vector<1x128xf32>
    %c0_54 = arith.constant 0 : index
    %c0_55 = arith.constant 0 : index
    %122 = vector.load %arg13[%c0_54, %c0_55] : memref<1x128xf32, #tpu.memory_space<vmem>>, vector<1x128xf32>
    %cst_56 = arith.constant dense<0.000000e+00> : vector<8xf32>
    %123 = vector.multi_reduction <add>, %120, %cst_56 [1] : vector<8x128xf32> to vector<8xf32>
    %124 = vector.shape_cast %123 : vector<8xf32> to vector<8x1xf32>
    %cst_57 = arith.constant 1.280000e+02 : f32
    %125 = vector.broadcast %cst_57 : f32 to vector<8x1xf32>
    %126 = arith.divf %124, %125 : vector<8x1xf32>
    %127 = vector.broadcast %126 : vector<8x1xf32> to vector<8x128xf32>
    %128 = arith.subf %120, %127 : vector<8x128xf32>
    %129 = arith.mulf %128, %128 : vector<8x128xf32>
    %cst_58 = arith.constant dense<0.000000e+00> : vector<8xf32>
    %130 = vector.multi_reduction <add>, %129, %cst_58 [1] : vector<8x128xf32> to vector<8xf32>
    %131 = vector.shape_cast %130 : vector<8xf32> to vector<8x1xf32>
    %cst_59 = arith.constant 1.280000e+02 : f32
    %132 = vector.broadcast %cst_59 : f32 to vector<8x1xf32>
    %133 = arith.divf %131, %132 : vector<8x1xf32>
    %134 = vector.broadcast %126 : vector<8x1xf32> to vector<8x128xf32>
    %135 = arith.subf %120, %134 : vector<8x128xf32>
    %cst_60 = arith.constant 9.99999974E-6 : f32
    %136 = vector.broadcast %cst_60 : f32 to vector<8x1xf32>
    %137 = arith.addf %133, %136 : vector<8x1xf32>
    %138 = math.rsqrt %137 : vector<8x1xf32>
    %139 = vector.broadcast %138 : vector<8x1xf32> to vector<8x128xf32>
    %140 = arith.mulf %135, %139 : vector<8x128xf32>
    %141 = vector.broadcast %121 : vector<1x128xf32> to vector<8x128xf32>
    %142 = arith.mulf %140, %141 : vector<8x128xf32>
    %143 = vector.broadcast %122 : vector<1x128xf32> to vector<8x128xf32>
    %144 = arith.addf %142, %143 : vector<8x128xf32>
    %145 = arith.truncf %144 : vector<8x128xf32> to vector<8x128xbf16>
    %c0_61 = arith.constant 0 : index
    %c0_62 = arith.constant 0 : index
    %146 = vector.load %arg14[%c0_61, %c0_62] : memref<128x256xbf16, #tpu.memory_space<vmem>>, vector<128x256xbf16>
    %cst_63 = arith.constant dense<0.000000e+00> : vector<8x256xf32>
    %147 = tpu.matmul %145, %146, %cst_63 {dimension_numbers = #tpu.dot_dimension_numbers<[1], [0], [0], [1], [0, 0, 1, 1], [], []>} : vector<8x128xbf16>, vector<128x256xbf16>, vector<8x256xf32> -> vector<8x256xf32>
    %c0_64 = arith.constant 0 : index
    %c0_65 = arith.constant 0 : index
    %148 = vector.load %arg15[%c0_64, %c0_65] : memref<1x256xf32, #tpu.memory_space<vmem>>, vector<1x256xf32>
    %149 = vector.broadcast %148 : vector<1x256xf32> to vector<8x256xf32>
    %150 = arith.addf %147, %149 : vector<8x256xf32>
    %cst_66 = arith.constant 0.000000e+00 : f32
    %151 = vector.broadcast %cst_66 : f32 to vector<8x256xf32>
    %152 = arith.maximumf %150, %151 : vector<8x256xf32>
    %153 = arith.truncf %152 : vector<8x256xf32> to vector<8x256xbf16>
    %c0_67 = arith.constant 0 : index
    %c0_68 = arith.constant 0 : index
    %154 = vector.load %arg16[%c0_67, %c0_68] : memref<256x128xbf16, #tpu.memory_space<vmem>>, vector<256x128xbf16>
    %cst_69 = arith.constant dense<0.000000e+00> : vector<8x128xf32>
    %155 = tpu.matmul %153, %154, %cst_69 {dimension_numbers = #tpu.dot_dimension_numbers<[1], [0], [0], [1], [0, 0, 1, 1], [], []>} : vector<8x256xbf16>, vector<256x128xbf16>, vector<8x128xf32> -> vector<8x128xf32>
    %c0_70 = arith.constant 0 : index
    %c0_71 = arith.constant 0 : index
    %156 = vector.load %arg17[%c0_70, %c0_71] : memref<1x128xf32, #tpu.memory_space<vmem>>, vector<1x128xf32>
    %157 = vector.broadcast %156 : vector<1x128xf32> to vector<8x128xf32>
    %158 = arith.addf %155, %157 : vector<8x128xf32>
    %159 = arith.addf %144, %158 : vector<8x128xf32>
    %c0_72 = arith.constant 0 : index
    %c0_73 = arith.constant 0 : index
    %160 = vector.load %arg18[%c0_72, %c0_73] : memref<1x128xf32, #tpu.memory_space<vmem>>, vector<1x128xf32>
    %c0_74 = arith.constant 0 : index
    %c0_75 = arith.constant 0 : index
    %161 = vector.load %arg19[%c0_74, %c0_75] : memref<1x128xf32, #tpu.memory_space<vmem>>, vector<1x128xf32>
    %cst_76 = arith.constant dense<0.000000e+00> : vector<8xf32>
    %162 = vector.multi_reduction <add>, %159, %cst_76 [1] : vector<8x128xf32> to vector<8xf32>
    %163 = vector.shape_cast %162 : vector<8xf32> to vector<8x1xf32>
    %cst_77 = arith.constant 1.280000e+02 : f32
    %164 = vector.broadcast %cst_77 : f32 to vector<8x1xf32>
    %165 = arith.divf %163, %164 : vector<8x1xf32>
    %166 = vector.broadcast %165 : vector<8x1xf32> to vector<8x128xf32>
    %167 = arith.subf %159, %166 : vector<8x128xf32>
    %168 = arith.mulf %167, %167 : vector<8x128xf32>
    %cst_78 = arith.constant dense<0.000000e+00> : vector<8xf32>
    %169 = vector.multi_reduction <add>, %168, %cst_78 [1] : vector<8x128xf32> to vector<8xf32>
    %170 = vector.shape_cast %169 : vector<8xf32> to vector<8x1xf32>
    %cst_79 = arith.constant 1.280000e+02 : f32
    %171 = vector.broadcast %cst_79 : f32 to vector<8x1xf32>
    %172 = arith.divf %170, %171 : vector<8x1xf32>
    %173 = vector.broadcast %165 : vector<8x1xf32> to vector<8x128xf32>
    %174 = arith.subf %159, %173 : vector<8x128xf32>
    %cst_80 = arith.constant 9.99999974E-6 : f32
    %175 = vector.broadcast %cst_80 : f32 to vector<8x1xf32>
    %176 = arith.addf %172, %175 : vector<8x1xf32>
    %177 = math.rsqrt %176 : vector<8x1xf32>
    %178 = vector.broadcast %177 : vector<8x1xf32> to vector<8x128xf32>
    %179 = arith.mulf %174, %178 : vector<8x128xf32>
    %180 = vector.broadcast %160 : vector<1x128xf32> to vector<8x128xf32>
    %181 = arith.mulf %179, %180 : vector<8x128xf32>
    %182 = vector.broadcast %161 : vector<1x128xf32> to vector<8x128xf32>
    %183 = arith.addf %181, %182 : vector<8x128xf32>
    %c0_81 = arith.constant 0 : index
    %c0_82 = arith.constant 0 : index
    %c0_83 = arith.constant 0 : index
    %184 = vector.load %arg20[%c0_81, %c0_82, %c0_83] : memref<1x8x128xf32, #tpu.memory_space<vmem>>, vector<1x8x128xf32>
    %185 = vector.shape_cast %184 : vector<1x8x128xf32> to vector<8x128xf32>
    %186 = vector.shape_cast %183 : vector<8x128xf32> to vector<1x8x128xf32>
    tpu.vector_store %arg20[%c0_81, %c0_82, %c0_83], %186 {strides = array<i32>} : memref<1x8x128xf32, #tpu.memory_space<vmem>>, vector<1x8x128xf32>,
    return
  }
  func.func @transform_0(%arg0: i32, %arg1: i32) -> (i32, i32, i32) {
    %c0_i32 = arith.constant 0 : i32
    %c0_i32_0 = arith.constant 0 : i32
    %c0_i32_1 = arith.constant 0 : i32
    return %arg0, %c0_i32, %c0_i32_0 : i32, i32, i32
  }
  func.func @transform_1(%arg0: i32, %arg1: i32) -> (i32, i32, i32) {
    %c0_i32 = arith.constant 0 : i32
    %c0_i32_0 = arith.constant 0 : i32
    %c0_i32_1 = arith.constant 0 : i32
    return %arg0, %c0_i32, %c0_i32_0 : i32, i32, i32
  }
  func.func @transform_2(%arg0: i32, %arg1: i32) -> (i32, i32) {
    %c0_i32 = arith.constant 0 : i32
    %c0_i32_0 = arith.constant 0 : i32
    %c0_i32_1 = arith.constant 0 : i32
    return %c0_i32, %c0_i32_0 : i32, i32
  }
  func.func @transform_3(%arg0: i32, %arg1: i32) -> (i32, i32) {
    %c0_i32 = arith.constant 0 : i32
    %c0_i32_0 = arith.constant 0 : i32
    %c0_i32_1 = arith.constant 0 : i32
    return %c0_i32, %c0_i32_0 : i32, i32
  }
  func.func @transform_4(%arg0: i32, %arg1: i32) -> (i32, i32) {
    %c0_i32 = arith.constant 0 : i32
    %c0_i32_0 = arith.constant 0 : i32
    %c0_i32_1 = arith.constant 0 : i32
    return %c0_i32, %c0_i32_0 : i32, i32
  }
  func.func @transform_5(%arg0: i32, %arg1: i32) -> (i32, i32) {
    %c0_i32 = arith.constant 0 : i32
    %c0_i32_0 = arith.constant 0 : i32
    %c0_i32_1 = arith.constant 0 : i32
    return %c0_i32, %c0_i32_0 : i32, i32
  }
  func.func @transform_6(%arg0: i32, %arg1: i32) -> (i32, i32) {
    %c0_i32 = arith.constant 0 : i32
    %c0_i32_0 = arith.constant 0 : i32
    %c0_i32_1 = arith.constant 0 : i32
    return %c0_i32, %c0_i32_0 : i32, i32
  }
  func.func @transform_7(%arg0: i32, %arg1: i32) -> (i32, i32) {
    %c0_i32 = arith.constant 0 : i32
    %c0_i32_0 = arith.constant 0 : i32
    %c0_i32_1 = arith.constant 0 : i32
    return %c0_i32, %c0_i32_0 : i32, i32
  }
  func.func @transform_8(%arg0: i32, %arg1: i32) -> (i32, i32) {
    %c0_i32 = arith.constant 0 : i32
    %c0_i32_0 = arith.constant 0 : i32
    %c0_i32_1 = arith.constant 0 : i32
    return %c0_i32, %c0_i32_0 : i32, i32
  }
  func.func @transform_9(%arg0: i32, %arg1: i32) -> (i32, i32) {
    %c0_i32 = arith.constant 0 : i32
    %c0_i32_0 = arith.constant 0 : i32
    %c0_i32_1 = arith.constant 0 : i32
    return %c0_i32, %c0_i32_0 : i32, i32
  }
  func.func @transform_10(%arg0: i32, %arg1: i32) -> (i32, i32) {
    %c0_i32 = arith.constant 0 : i32
    %c0_i32_0 = arith.constant 0 : i32
    %c0_i32_1 = arith.constant 0 : i32
    return %c0_i32, %c0_i32_0 : i32, i32
  }
  func.func @transform_11(%arg0: i32, %arg1: i32) -> (i32, i32) {
    %c0_i32 = arith.constant 0 : i32
    %c0_i32_0 = arith.constant 0 : i32
    %c0_i32_1 = arith.constant 0 : i32
    return %c0_i32, %c0_i32_0 : i32, i32
  }
  func.func @transform_12(%arg0: i32, %arg1: i32) -> (i32, i32) {
    %c0_i32 = arith.constant 0 : i32
    %c0_i32_0 = arith.constant 0 : i32
    %c0_i32_1 = arith.constant 0 : i32
    return %c0_i32, %c0_i32_0 : i32, i32
  }
  func.func @transform_13(%arg0: i32, %arg1: i32) -> (i32, i32) {
    %c0_i32 = arith.constant 0 : i32
    %c0_i32_0 = arith.constant 0 : i32
    %c0_i32_1 = arith.constant 0 : i32
    return %c0_i32, %c0_i32_0 : i32, i32
  }
  func.func @transform_14(%arg0: i32, %arg1: i32) -> (i32, i32) {
    %c0_i32 = arith.constant 0 : i32
    %c0_i32_0 = arith.constant 0 : i32
    %c0_i32_1 = arith.constant 0 : i32
    return %c0_i32, %c0_i32_0 : i32, i32
  }
  func.func @transform_15(%arg0: i32, %arg1: i32) -> (i32, i32) {
    %c0_i32 = arith.constant 0 : i32
    %c0_i32_0 = arith.constant 0 : i32
    %c0_i32_1 = arith.constant 0 : i32
    return %c0_i32, %c0_i32_0 : i32, i32
  }
  func.func @transform_16(%arg0: i32, %arg1: i32) -> (i32, i32) {
    %c0_i32 = arith.constant 0 : i32
    %c0_i32_0 = arith.constant 0 : i32
    %c0_i32_1 = arith.constant 0 : i32
    return %c0_i32, %c0_i32_0 : i32, i32
  }
  func.func @transform_17(%arg0: i32, %arg1: i32) -> (i32, i32) {
    %c0_i32 = arith.constant 0 : i32
    %c0_i32_0 = arith.constant 0 : i32
    %c0_i32_1 = arith.constant 0 : i32
    return %c0_i32, %c0_i32_0 : i32, i32
  }
  func.func @transform_18(%arg0: i32, %arg1: i32) -> (i32, i32, i32) {
    %c0_i32 = arith.constant 0 : i32
    %c0_i32_0 = arith.constant 0 : i32
    return %arg0, %arg1, %c0_i32 : i32, i32, i32
  }
  func.func @transform_19(%arg0: i32, %arg1: i32) -> (i32, i32, i32) {
    %c0_i32 = arith.constant 0 : i32
    %c0_i32_0 = arith.constant 0 : i32
    return %arg0, %arg1, %c0_i32 : i32, i32, i32
  }
}

</mosaic_0001>

<llo_original>
// kernel: tpu_custom_call.1
$region0: #{tpu_custom_call.1}
  #allocation0 [shape = 'u32[]', space=smem, size = 0x4, offset = 0x4, fixed_abs, tag = 'smem constant byte address 0x4 - core index']
  #allocation1 [shape = 'u32[144,128]{1,0:T(1,128)}', space=vmem, size = 0x12000, scoped, tag = 'internal scratch']
  #allocation2 [shape = 'bf16[128,16]{1,0:T(16,128)(2,1)}', space=vmem, size = 0x8000, scoped, tag = 'scratch operand']
  #allocation3 [shape = 'bf16[16,128]{1,0:T(16,128)(2,1)}', space=vmem, size = 0x1000, scoped, tag = 'scratch operand']
  %s0 = inlined_call_operand.vmem [shape: f32[2,16,128], index: 0, kind: input, shape index: {}]
  %s1 = inlined_call_operand.vmem [shape: f32[2,1,16], index: 1, kind: input, shape index: {}]
  %s2 = inlined_call_operand.hbm [shape: bf16[128,128], index: 2, kind: input, shape index: {}]
  %s3 = inlined_call_operand.vmem [shape: f32[1,128], index: 3, kind: input, shape index: {}]
  %s4 = inlined_call_operand.hbm [shape: bf16[128,128], index: 4, kind: input, shape index: {}]
  %s5 = inlined_call_operand.vmem [shape: f32[128,1], index: 5, kind: input, shape index: {}]
  %s6 = inlined_call_operand.hbm [shape: bf16[128,128], index: 6, kind: input, shape index: {}]
  %s7 = inlined_call_operand.vmem [shape: f32[1,128], index: 7, kind: input, shape index: {}]
  %s8 = inlined_call_operand.hbm [shape: bf16[128,128], index: 8, kind: input, shape index: {}]
  %s9 = inlined_call_operand.vmem [shape: f32[1,128], index: 9, kind: input, shape index: {}]
  %s10 = inlined_call_operand.vmem [shape: f32[1,128], index: 10, kind: input, shape index: {}]
  %s11 = inlined_call_operand.vmem [shape: f32[1,128], index: 11, kind: input, shape index: {}]
  %s12 = inlined_call_operand.vmem [shape: bf16[128,256], index: 12, kind: input, shape index: {}]
  %s13 = inlined_call_operand.vmem [shape: f32[1,256], index: 13, kind: input, shape index: {}]
  %s14 = inlined_call_operand.hbm [shape: bf16[256,128], index: 14, kind: input, shape index: {}]
  %s15 = inlined_call_operand.vmem [shape: f32[1,128], index: 15, kind: input, shape index: {}]
  %s16 = inlined_call_operand.vmem [shape: f32[1,128], index: 16, kind: input, shape index: {}]
  %s17 = inlined_call_operand.vmem [shape: f32[1,128], index: 17, kind: input, shape index: {}]
  %s18 = inlined_call_operand.hbm [shape: f32[2,16,128], index: 18, kind: output, shape index: {0}]
  %s19 = inlined_call_operand.hbm [shape: f32[2,16,16], index: 19, kind: output, shape index: {1}]
  %20 = xla_tuple %s18, %s19
  %s21 = sld [smem:[#allocation0]]
  $region137: #{tpu_custom_call.1} parent=0
    _
  %s23 = ssub.s32 1, %s21
  %s24 = scalar_select 0, %s23, %s21
  $region1: #{tpu_custom_call.1} parent=0
    #allocation4 [shape = 'u8[32768]{0}', space=vmem, size = 0x8000, scoped, tag = 'input window, operand 2, single buffered']
    #allocation5 [shape = 's32[2]{0}', space=sflag, size = 0x8, scoped, tag = 'scoped memory for tpu_custom_call.1']
    #allocation6 [shape = 's32[2]{0}', space=sflag, size = 0x8, scoped, tag = 'scoped memory for tpu_custom_call.1']
    #allocation7 [shape = 'u8[32768]{0}', space=vmem, size = 0x8000, scoped, tag = 'input window, operand 4, single buffered']
    #allocation8 [shape = 's32[1]{0}', space=sflag, size = 0x4, scoped, tag = 'scoped memory for tpu_custom_call.1']
    #allocation9 [shape = 'u8[32768]{0}', space=vmem, size = 0x8000, scoped, tag = 'input window, operand 6, single buffered']
    #allocation10 [shape = 'u8[32768]{0}', space=vmem, size = 0x8000, scoped, tag = 'input window, operand 8, single buffered']
    #allocation11 [shape = 's32[1]{0}', space=sflag, size = 0x4, scoped, tag = 'scoped memory for tpu_custom_call.1']
    #allocation12 [shape = 'u8[65536]{0}', space=vmem, size = 0x10000, scoped, tag = 'input window, operand 14, single buffered']
    #allocation13 [shape = 'u8[8192]{0}', space=vmem, size = 0x2000, scoped, tag = 'output window, operand 0']
    #allocation14 [shape = 'u8[8192]{0}', space=vmem, size = 0x2000, scoped, tag = 'output window, operand 1']
    #allocation15 [shape = 's32[2]{0}', space=sflag, size = 0x8, scoped, tag = 'scoped memory for tpu_custom_call.1']
    %25 = vsyncpa [#allocation5], 0
    %26 = vsyncpa [#allocation8], 0
    %27 = vsyncpa [#allocation11], 0
    %28 = vsyncpa [#allocation6], 0
    %s29 = scalar_lea.sflag [#allocation6], 1
    %30 = vsyncpa %s29, 0
    %31 = vsyncpa [#allocation15], 0
    %s32 = scalar_lea.sflag [#allocation15], 1
    %33 = vsyncpa %s32, 0
    loop: start=0, step=1, limit=6
    $region2: #{tpu_custom_call.1} parent=1 // loop_pre_header
      _
    $region3: #{tpu_custom_call.1} parent=1 // loop_header
      %s35 = sphi 0, %s39
      %p36 = scmp.ge.s32.totalorder %s35, 6
      %s42 = sphi 0, %s54
      %s43 = sphi 0, %s50
      %s44 = sphi 0, %s42
      %s45 = sphi 0, %s43
      %s46 = sphi 0, %s44
      %s47 = sphi 0, %s45
      %s57 = sphi 0, %s59
      %s60 = sphi 0, %s57
      %s61 = sphi 0, %s60
      %s77 = sphi 0, %s61
      %s83 = sphi 0, %s85
      %s86 = sphi 0, %s83
      %s87 = sphi 0, %s86
      %s103 = sphi 0, %s87
      %s107 = sphi 0, %s107
      %s109 = sphi 0, %s107
      %s110 = sphi 0, %s109
      %s124 = sphi 0, %s110
      %s128 = sphi 0, %s128
      %s130 = sphi 0, %s128
      %s131 = sphi 0, %s130
      %s145 = sphi 0, %s131
      %s149 = sphi 0, %s149
      %s151 = sphi 0, %s149
      %s152 = sphi 0, %s151
      %s166 = sphi 0, %s152
      %s170 = sphi 0, %s170
      %s172 = sphi 0, %s170
      %s173 = sphi 0, %s172
      %s187 = sphi 0, %s173
      %s191 = sphi 0, %s191
      %s193 = sphi 0, %s191
      %s194 = sphi 0, %s193
      %s208 = sphi 0, %s194
      %s212 = sphi 0, %s212
      %s214 = sphi 0, %s212
      %s215 = sphi 0, %s214
      %s229 = sphi 0, %s215
      %s233 = sphi 0, %s233
      %s235 = sphi 0, %s233
      %s236 = sphi 0, %s235
      %s250 = sphi 0, %s236
      %s254 = sphi 0, %s254
      %s256 = sphi 0, %s254
      %s257 = sphi 0, %s256
      %s271 = sphi 0, %s257
      %s275 = sphi 0, %s275
      %s277 = sphi 0, %s275
      %s278 = sphi 0, %s277
      %s292 = sphi 0, %s278
      %s296 = sphi 0, %s296
      %s298 = sphi 0, %s296
      %s299 = sphi 0, %s298
      %s313 = sphi 0, %s299
      %s317 = sphi 0, %s317
      %s319 = sphi 0, %s317
      %s320 = sphi 0, %s319
      %s334 = sphi 0, %s320
      %s338 = sphi 0, %s338
      %s340 = sphi 0, %s338
      %s341 = sphi 0, %s340
      %s355 = sphi 0, %s341
      %s359 = sphi 0, %s359
      %s361 = sphi 0, %s359
      %s362 = sphi 0, %s361
      %s376 = sphi 0, %s362
      %s380 = sphi 0, %s380
      %s382 = sphi 0, %s380
      %s383 = sphi 0, %s382
      %s397 = sphi 0, %s383
      %s401 = sphi 0, %s401
      %s403 = sphi 0, %s401
      %s404 = sphi 0, %s403
      %s418 = sphi 0, %s404
      %s422 = sphi 0, %s422
      %s424 = sphi 0, %s422
      %s425 = sphi 0, %s424
      %s439 = sphi 0, %s425
      %s447 = sphi 0, %s449
      %s450 = sphi 0, %s447
      %s451 = sphi 0, %s450
      %s467 = sphi 0, %s451
      %s475 = sphi 0, %s477
      %s478 = sphi 0, %s475
      %s479 = sphi 0, %s478
      %s495 = sphi 0, %s479
    $region4: #{tpu_custom_call.1} parent=1 // loop_header_branch
      %38 = sbr.rel (%p36) target = $region8
    $region5: #{tpu_custom_call.1} parent=1 // loop_body
      %s40 = ssub.s32 %s35, 1
      %s41 = ssub.s32 %s35, 2
      %s48 = sadd.s32 1, %s43
      %p49 = scmp.ge.s32.totalorder %s48, 2
      %s50 = scalar_select %p49, 0, %s48
      %s51 = sadd.s32 1, %s42
      %s52 = scalar_select %p49, %s51, %s42
      %p53 = scmp.ge.s32.totalorder %s52, 2
      %s54 = scalar_select %p53, 0, %s52
      %s55 = ssub.s32 %s42, %s54
      %p56 = scmp.eq.s32.totalorder %s55, 0
      %s58 = sadd.s32 %s57, 1
      %s59 = scalar_select %p56, %s57, %s58
      %p62 = pneg %p56
      %p63 = scmp.eq.s32.totalorder %s35, 3
      %p64 = por %p62, %p63
      %p65 = scmp.ne.s32.totalorder %s57, %s60
      %p66 = scmp.eq.s32.totalorder %s35, 0
      %p67 = por %p65, %p66
      %p68 = scmp.ne.s32.totalorder %s57, %s60
      %p69 = scmp.eq.s32.totalorder %s40, 3
      %p70 = por %p68, %p69
      %p71 = scmp.ne.s32.totalorder %s60, %s61
      %p72 = scmp.eq.s32.totalorder %s40, 0
      %p73 = por %p71, %p72
      %p74 = scmp.ne.s32.totalorder %s60, %s61
      %p75 = scmp.eq.s32.totalorder %s41, 3
      %p76 = por %p74, %p75
      %p78 = scmp.ne.s32.totalorder %s61, %s77
      %p79 = scmp.eq.s32.totalorder %s41, 0
      %p80 = por %p78, %p79
      %s81 = ssub.s32 %s42, %s54
      %p82 = scmp.eq.s32.totalorder %s81, 0
      %s84 = sadd.s32 %s83, 1
      %s85 = scalar_select %p82, %s83, %s84
      %p88 = pneg %p82
      %p89 = scmp.eq.s32.totalorder %s35, 3
      %p90 = por %p88, %p89
      %p91 = scmp.ne.s32.totalorder %s83, %s86
      %p92 = scmp.eq.s32.totalorder %s35, 0
      %p93 = por %p91, %p92
      %p94 = scmp.ne.s32.totalorder %s83, %s86
      %p95 = scmp.eq.s32.totalorder %s40, 3
      %p96 = por %p94, %p95
      %p97 = scmp.ne.s32.totalorder %s86, %s87
      %p98 = scmp.eq.s32.totalorder %s40, 0
      %p99 = por %p97, %p98
      %p100 = scmp.ne.s32.totalorder %s86, %s87
      %p101 = scmp.eq.s32.totalorder %s41, 3
      %p102 = por %p100, %p101
      %p104 = scmp.ne.s32.totalorder %s87, %s103
      %p105 = scmp.eq.s32.totalorder %s41, 0
      %p106 = por %p104, %p105
      %s108 = sadd.s32 %s107, 1
      %p111 = scmp.eq.s32.totalorder %s35, 3
      %p112 = scmp.ne.s32.totalorder %s107, %s109
      %p113 = scmp.eq.s32.totalorder %s35, 0
      %p114 = por %p112, %p113
      %p115 = scmp.ne.s32.totalorder %s107, %s109
      %p116 = scmp.eq.s32.totalorder %s40, 3
      %p117 = por %p115, %p116
      %p118 = scmp.ne.s32.totalorder %s109, %s110
      %p119 = scmp.eq.s32.totalorder %s40, 0
      %p120 = por %p118, %p119
      %p121 = scmp.ne.s32.totalorder %s109, %s110
      %p122 = scmp.eq.s32.totalorder %s41, 3
      %p123 = por %p121, %p122
      %p125 = scmp.ne.s32.totalorder %s110, %s124
      %p126 = scmp.eq.s32.totalorder %s41, 0
      %p127 = por %p125, %p126
      %s129 = sadd.s32 %s128, 1
      %p132 = scmp.eq.s32.totalorder %s35, 3
      %p133 = scmp.ne.s32.totalorder %s128, %s130
      %p134 = scmp.eq.s32.totalorder %s35, 0
      %p135 = por %p133, %p134
      %p136 = scmp.ne.s32.totalorder %s128, %s130
      %p137 = scmp.eq.s32.totalorder %s40, 3
      %p138 = por %p136, %p137
      %p139 = scmp.ne.s32.totalorder %s130, %s131
      %p140 = scmp.eq.s32.totalorder %s40, 0
      %p141 = por %p139, %p140
      %p142 = scmp.ne.s32.totalorder %s130, %s131
      %p143 = scmp.eq.s32.totalorder %s41, 3
      %p144 = por %p142, %p143
      %p146 = scmp.ne.s32.totalorder %s131, %s145
      %p147 = scmp.eq.s32.totalorder %s41, 0
      %p148 = por %p146, %p147
      %s150 = sadd.s32 %s149, 1
      %p153 = scmp.eq.s32.totalorder %s35, 3
      %p154 = scmp.ne.s32.totalorder %s149, %s151
      %p155 = scmp.eq.s32.totalorder %s35, 0
      %p156 = por %p154, %p155
      %p157 = scmp.ne.s32.totalorder %s149, %s151
      %p158 = scmp.eq.s32.totalorder %s40, 3
      %p159 = por %p157, %p158
      %p160 = scmp.ne.s32.totalorder %s151, %s152
      %p161 = scmp.eq.s32.totalorder %s40, 0
      %p162 = por %p160, %p161
      %p163 = scmp.ne.s32.totalorder %s151, %s152
      %p164 = scmp.eq.s32.totalorder %s41, 3
      %p165 = por %p163, %p164
      %p167 = scmp.ne.s32.totalorder %s152, %s166
      %p168 = scmp.eq.s32.totalorder %s41, 0
      %p169 = por %p167, %p168
      %s171 = sadd.s32 %s170, 1
      %p174 = scmp.eq.s32.totalorder %s35, 3
      %p175 = scmp.ne.s32.totalorder %s170, %s172
      %p176 = scmp.eq.s32.totalorder %s35, 0
      %p177 = por %p175, %p176
      %p178 = scmp.ne.s32.totalorder %s170, %s172
      %p179 = scmp.eq.s32.totalorder %s40, 3
      %p180 = por %p178, %p179
      %p181 = scmp.ne.s32.totalorder %s172, %s173
      %p182 = scmp.eq.s32.totalorder %s40, 0
      %p183 = por %p181, %p182
      %p184 = scmp.ne.s32.totalorder %s172, %s173
      %p185 = scmp.eq.s32.totalorder %s41, 3
      %p186 = por %p184, %p185
      %p188 = scmp.ne.s32.totalorder %s173, %s187
      %p189 = scmp.eq.s32.totalorder %s41, 0
      %p190 = por %p188, %p189
      %s192 = sadd.s32 %s191, 1
      %p195 = scmp.eq.s32.totalorder %s35, 3
      %p196 = scmp.ne.s32.totalorder %s191, %s193
      %p197 = scmp.eq.s32.totalorder %s35, 0
      %p198 = por %p196, %p197
      %p199 = scmp.ne.s32.totalorder %s191, %s193
      %p200 = scmp.eq.s32.totalorder %s40, 3
      %p201 = por %p199, %p200
      %p202 = scmp.ne.s32.totalorder %s193, %s194
      %p203 = scmp.eq.s32.totalorder %s40, 0
      %p204 = por %p202, %p203
      %p205 = scmp.ne.s32.totalorder %s193, %s194
      %p206 = scmp.eq.s32.totalorder %s41, 3
      %p207 = por %p205, %p206
      %p209 = scmp.ne.s32.totalorder %s194, %s208
      %p210 = scmp.eq.s32.totalorder %s41, 0
      %p211 = por %p209, %p210
      %s213 = sadd.s32 %s212, 1
      %p216 = scmp.eq.s32.totalorder %s35, 3
      %p217 = scmp.ne.s32.totalorder %s212, %s214
      %p218 = scmp.eq.s32.totalorder %s35, 0
      %p219 = por %p217, %p218
      %p220 = scmp.ne.s32.totalorder %s212, %s214
      %p221 = scmp.eq.s32.totalorder %s40, 3
      %p222 = por %p220, %p221
      %p223 = scmp.ne.s32.totalorder %s214, %s215
      %p224 = scmp.eq.s32.totalorder %s40, 0
      %p225 = por %p223, %p224
      %p226 = scmp.ne.s32.totalorder %s214, %s215
      %p227 = scmp.eq.s32.totalorder %s41, 3
      %p228 = por %p226, %p227
      %p230 = scmp.ne.s32.totalorder %s215, %s229
      %p231 = scmp.eq.s32.totalorder %s41, 0
      %p232 = por %p230, %p231
      %s234 = sadd.s32 %s233, 1
      %p237 = scmp.eq.s32.totalorder %s35, 3
      %p238 = scmp.ne.s32.totalorder %s233, %s235
      %p239 = scmp.eq.s32.totalorder %s35, 0
      %p240 = por %p238, %p239
      %p241 = scmp.ne.s32.totalorder %s233, %s235
      %p242 = scmp.eq.s32.totalorder %s40, 3
      %p243 = por %p241, %p242
      %p244 = scmp.ne.s32.totalorder %s235, %s236
      %p245 = scmp.eq.s32.totalorder %s40, 0
      %p246 = por %p244, %p245
      %p247 = scmp.ne.s32.totalorder %s235, %s236
      %p248 = scmp.eq.s32.totalorder %s41, 3
      %p249 = por %p247, %p248
      %p251 = scmp.ne.s32.totalorder %s236, %s250
      %p252 = scmp.eq.s32.totalorder %s41, 0
      %p253 = por %p251, %p252
      %s255 = sadd.s32 %s254, 1
      %p258 = scmp.eq.s32.totalorder %s35, 3
      %p259 = scmp.ne.s32.totalorder %s254, %s256
      %p260 = scmp.eq.s32.totalorder %s35, 0
      %p261 = por %p259, %p260
      %p262 = scmp.ne.s32.totalorder %s254, %s256
      %p263 = scmp.eq.s32.totalorder %s40, 3
      %p264 = por %p262, %p263
      %p265 = scmp.ne.s32.totalorder %s256, %s257
      %p266 = scmp.eq.s32.totalorder %s40, 0
      %p267 = por %p265, %p266
      %p268 = scmp.ne.s32.totalorder %s256, %s257
      %p269 = scmp.eq.s32.totalorder %s41, 3
      %p270 = por %p268, %p269
      %p272 = scmp.ne.s32.totalorder %s257, %s271
      %p273 = scmp.eq.s32.totalorder %s41, 0
      %p274 = por %p272, %p273
      %s276 = sadd.s32 %s275, 1
      %p279 = scmp.eq.s32.totalorder %s35, 3
      %p280 = scmp.ne.s32.totalorder %s275, %s277
      %p281 = scmp.eq.s32.totalorder %s35, 0
      %p282 = por %p280, %p281
      %p283 = scmp.ne.s32.totalorder %s275, %s277
      %p284 = scmp.eq.s32.totalorder %s40, 3
      %p285 = por %p283, %p284
      %p286 = scmp.ne.s32.totalorder %s277, %s278
      %p287 = scmp.eq.s32.totalorder %s40, 0
      %p288 = por %p286, %p287
      %p289 = scmp.ne.s32.totalorder %s277, %s278
      %p290 = scmp.eq.s32.totalorder %s41, 3
      %p291 = por %p289, %p290
      %p293 = scmp.ne.s32.totalorder %s278, %s292
      %p294 = scmp.eq.s32.totalorder %s41, 0
      %p295 = por %p293, %p294
      %s297 = sadd.s32 %s296, 1
      %p300 = scmp.eq.s32.totalorder %s35, 3
      %p301 = scmp.ne.s32.totalorder %s296, %s298
      %p302 = scmp.eq.s32.totalorder %s35, 0
      %p303 = por %p301, %p302
      %p304 = scmp.ne.s32.totalorder %s296, %s298
      %p305 = scmp.eq.s32.totalorder %s40, 3
      %p306 = por %p304, %p305
      %p307 = scmp.ne.s32.totalorder %s298, %s299
      %p308 = scmp.eq.s32.totalorder %s40, 0
      %p309 = por %p307, %p308
      %p310 = scmp.ne.s32.totalorder %s298, %s299
      %p311 = scmp.eq.s32.totalorder %s41, 3
      %p312 = por %p310, %p311
      %p314 = scmp.ne.s32.totalorder %s299, %s313
      %p315 = scmp.eq.s32.totalorder %s41, 0
      %p316 = por %p314, %p315
      %s318 = sadd.s32 %s317, 1
      %p321 = scmp.eq.s32.totalorder %s35, 3
      %p322 = scmp.ne.s32.totalorder %s317, %s319
      %p323 = scmp.eq.s32.totalorder %s35, 0
      %p324 = por %p322, %p323
      %p325 = scmp.ne.s32.totalorder %s317, %s319
      %p326 = scmp.eq.s32.totalorder %s40, 3
      %p327 = por %p325, %p326
      %p328 = scmp.ne.s32.totalorder %s319, %s320
      %p329 = scmp.eq.s32.totalorder %s40, 0
      %p330 = por %p328, %p329
      %p331 = scmp.ne.s32.totalorder %s319, %s320
      %p332 = scmp.eq.s32.totalorder %s41, 3
      %p333 = por %p331, %p332
      %p335 = scmp.ne.s32.totalorder %s320, %s334
      %p336 = scmp.eq.s32.totalorder %s41, 0
      %p337 = por %p335, %p336
      %s339 = sadd.s32 %s338, 1
      %p342 = scmp.eq.s32.totalorder %s35, 3
      %p343 = scmp.ne.s32.totalorder %s338, %s340
      %p344 = scmp.eq.s32.totalorder %s35, 0
      %p345 = por %p343, %p344
      %p346 = scmp.ne.s32.totalorder %s338, %s340
      %p347 = scmp.eq.s32.totalorder %s40, 3
      %p348 = por %p346, %p347
      %p349 = scmp.ne.s32.totalorder %s340, %s341
      %p350 = scmp.eq.s32.totalorder %s40, 0
      %p351 = por %p349, %p350
      %p352 = scmp.ne.s32.totalorder %s340, %s341
      %p353 = scmp.eq.s32.totalorder %s41, 3
      %p354 = por %p352, %p353
      %p356 = scmp.ne.s32.totalorder %s341, %s355
      %p357 = scmp.eq.s32.totalorder %s41, 0
      %p358 = por %p356, %p357
      %s360 = sadd.s32 %s359, 1
      %p363 = scmp.eq.s32.totalorder %s35, 3
      %p364 = scmp.ne.s32.totalorder %s359, %s361
      %p365 = scmp.eq.s32.totalorder %s35, 0
      %p366 = por %p364, %p365
      %p367 = scmp.ne.s32.totalorder %s359, %s361
      %p368 = scmp.eq.s32.totalorder %s40, 3
      %p369 = por %p367, %p368
      %p370 = scmp.ne.s32.totalorder %s361, %s362
      %p371 = scmp.eq.s32.totalorder %s40, 0
      %p372 = por %p370, %p371
      %p373 = scmp.ne.s32.totalorder %s361, %s362
      %p374 = scmp.eq.s32.totalorder %s41, 3
      %p375 = por %p373, %p374
      %p377 = scmp.ne.s32.totalorder %s362, %s376
      %p378 = scmp.eq.s32.totalorder %s41, 0
      %p379 = por %p377, %p378
      %s381 = sadd.s32 %s380, 1
      %p384 = scmp.eq.s32.totalorder %s35, 3
      %p385 = scmp.ne.s32.totalorder %s380, %s382
      %p386 = scmp.eq.s32.totalorder %s35, 0
      %p387 = por %p385, %p386
      %p388 = scmp.ne.s32.totalorder %s380, %s382
      %p389 = scmp.eq.s32.totalorder %s40, 3
      %p390 = por %p388, %p389
      %p391 = scmp.ne.s32.totalorder %s382, %s383
      %p392 = scmp.eq.s32.totalorder %s40, 0
      %p393 = por %p391, %p392
      %p394 = scmp.ne.s32.totalorder %s382, %s383
      %p395 = scmp.eq.s32.totalorder %s41, 3
      %p396 = por %p394, %p395
      %p398 = scmp.ne.s32.totalorder %s383, %s397
      %p399 = scmp.eq.s32.totalorder %s41, 0
      %p400 = por %p398, %p399
      %s402 = sadd.s32 %s401, 1
      %p405 = scmp.eq.s32.totalorder %s35, 3
      %p406 = scmp.ne.s32.totalorder %s401, %s403
      %p407 = scmp.eq.s32.totalorder %s35, 0
      %p408 = por %p406, %p407
      %p409 = scmp.ne.s32.totalorder %s401, %s403
      %p410 = scmp.eq.s32.totalorder %s40, 3
      %p411 = por %p409, %p410
      %p412 = scmp.ne.s32.totalorder %s403, %s404
      %p413 = scmp.eq.s32.totalorder %s40, 0
      %p414 = por %p412, %p413
      %p415 = scmp.ne.s32.totalorder %s403, %s404
      %p416 = scmp.eq.s32.totalorder %s41, 3
      %p417 = por %p415, %p416
      %p419 = scmp.ne.s32.totalorder %s404, %s418
      %p420 = scmp.eq.s32.totalorder %s41, 0
      %p421 = por %p419, %p420
      %s423 = sadd.s32 %s422, 1
      %p426 = scmp.eq.s32.totalorder %s35, 3
      %p427 = scmp.ne.s32.totalorder %s422, %s424
      %p428 = scmp.eq.s32.totalorder %s35, 0
      %p429 = por %p427, %p428
      %p430 = scmp.ne.s32.totalorder %s422, %s424
      %p431 = scmp.eq.s32.totalorder %s40, 3
      %p432 = por %p430, %p431
      %p433 = scmp.ne.s32.totalorder %s424, %s425
      %p434 = scmp.eq.s32.totalorder %s40, 0
      %p435 = por %p433, %p434
      %p436 = scmp.ne.s32.totalorder %s424, %s425
      %p437 = scmp.eq.s32.totalorder %s41, 3
      %p438 = por %p436, %p437
      %p440 = scmp.ne.s32.totalorder %s425, %s439
      %p441 = scmp.eq.s32.totalorder %s41, 0
      %p442 = por %p440, %p441
      %s443 = ssub.s32 %s42, %s54
      %s444 = ssub.s32 %s43, %s50
      %s445 = sor.u32 %s443, %s444
      %p446 = scmp.eq.s32.totalorder %s445, 0
      %s448 = sadd.s32 %s447, 1
      %s449 = scalar_select %p446, %s447, %s448
      %p452 = pneg %p446
      %p453 = scmp.eq.s32.totalorder %s35, 3
      %p454 = por %p452, %p453
      %p455 = scmp.ne.s32.totalorder %s447, %s450
      %p456 = scmp.eq.s32.totalorder %s35, 0
      %p457 = por %p455, %p456
      %p458 = scmp.ne.s32.totalorder %s447, %s450
      %p459 = scmp.eq.s32.totalorder %s40, 3
      %p460 = por %p458, %p459
      %p461 = scmp.ne.s32.totalorder %s450, %s451
      %p462 = scmp.eq.s32.totalorder %s40, 0
      %p463 = por %p461, %p462
      %p464 = scmp.ne.s32.totalorder %s450, %s451
      %p465 = scmp.eq.s32.totalorder %s41, 3
      %p466 = por %p464, %p465
      %p468 = scmp.ne.s32.totalorder %s451, %s467
      %p469 = scmp.eq.s32.totalorder %s41, 0
      %p470 = por %p468, %p469
      %s471 = ssub.s32 %s42, %s54
      %s472 = ssub.s32 %s43, %s50
      %s473 = sor.u32 %s471, %s472
      %p474 = scmp.eq.s32.totalorder %s473, 0
      %s476 = sadd.s32 %s475, 1
      %s477 = scalar_select %p474, %s475, %s476
      %p480 = pneg %p474
      %p481 = scmp.eq.s32.totalorder %s35, 3
      %p482 = por %p480, %p481
      %p483 = scmp.ne.s32.totalorder %s475, %s478
      %p484 = scmp.eq.s32.totalorder %s35, 0
      %p485 = por %p483, %p484
      %p486 = scmp.ne.s32.totalorder %s475, %s478
      %p487 = scmp.eq.s32.totalorder %s40, 3
      %p488 = por %p486, %p487
      %p489 = scmp.ne.s32.totalorder %s478, %s479
      %p490 = scmp.eq.s32.totalorder %s40, 0
      %p491 = por %p489, %p490
      %p492 = scmp.ne.s32.totalorder %s478, %s479
      %p493 = scmp.eq.s32.totalorder %s41, 3
      %p494 = por %p492, %p493
      %p496 = scmp.ne.s32.totalorder %s479, %s495
      %p497 = scmp.eq.s32.totalorder %s41, 0
      %p498 = por %p496, %p497
      %p499 = scmp.le.s32.totalorder 1, %s35
      %p500 = scmp.lt.s32.totalorder %s35, 5
      %p501 = pnand %p499, %p500
      %p502 = pneg %p501
      // Predicated region
      $region9: #{tpu_custom_call.1} parent=5 // pred_check
        _
      $region10: #{tpu_custom_call.1} parent=5 // pred_check_branch
        %504 = sbr.rel (%p501) target = $region12
      $region11: #{tpu_custom_call.1} parent=5 // pred_region
        %s505 = ssub.s32 %s35, 1
        // Predicated region
        $region13: #{tpu_custom_call.1} parent=11 // pred_check
          %p506 = pneg %p120
        $region14: #{tpu_custom_call.1} parent=11 // pred_check_branch
          %508 = sbr.rel (%p506) target = $region16
        $region15: #{tpu_custom_call.1} parent=11 // pred_region
          %s510 = ssub.s32 1024, 1024
          %511 = vsyncadd [#allocation5], %s510
          %s512 = sshll.u32 [#allocation4], 4
          %s513 = int_to_ptr.vmem [resolvable:$true] %s512
          %518 = dma.hbm_to_vmem [thread:$0]  %s2, 1024, %s513, [#allocation5], 64, 64, 4
        $region16: #{tpu_custom_call.1} parent=11 // pred_fallthru
          _
        // Predicated region
        $region17: #{tpu_custom_call.1} parent=11 // pred_check
          %p519 = pneg %p141
        $region18: #{tpu_custom_call.1} parent=11 // pred_check_branch
          %521 = sbr.rel (%p519) target = $region20
        $region19: #{tpu_custom_call.1} parent=11 // pred_region
          _
        $region20: #{tpu_custom_call.1} parent=11 // pred_fallthru
          _
        // Predicated region
        $region21: #{tpu_custom_call.1} parent=11 // pred_check
          %p522 = pneg %p162
        $region22: #{tpu_custom_call.1} parent=11 // pred_check_branch
          %524 = sbr.rel (%p522) target = $region24
        $region23: #{tpu_custom_call.1} parent=11 // pred_region
          %s526 = ssub.s32 1024, 1024
          %527 = vsyncadd [#allocation8], %s526
          %s528 = sshll.u32 [#allocation7], 4
          %s529 = int_to_ptr.vmem [resolvable:$true] %s528
          %534 = dma.hbm_to_vmem [thread:$0]  %s4, 1024, %s529, [#allocation8], 64, 64, 4
        $region24: #{tpu_custom_call.1} parent=11 // pred_fallthru
          _
        // Predicated region
        $region25: #{tpu_custom_call.1} parent=11 // pred_check
          %p535 = pneg %p183
        $region26: #{tpu_custom_call.1} parent=11 // pred_check_branch
          %537 = sbr.rel (%p535) target = $region28
        $region27: #{tpu_custom_call.1} parent=11 // pred_region
          _
        $region28: #{tpu_custom_call.1} parent=11 // pred_fallthru
          _
        // Predicated region
        $region29: #{tpu_custom_call.1} parent=11 // pred_check
          %p538 = pneg %p204
        $region30: #{tpu_custom_call.1} parent=11 // pred_check_branch
          %540 = sbr.rel (%p538) target = $region32
        $region31: #{tpu_custom_call.1} parent=11 // pred_region
          %s542 = ssub.s32 1024, 1024
          %543 = vsyncadd [#allocation8], %s542
          %s544 = sshll.u32 [#allocation9], 4
          %s545 = int_to_ptr.vmem [resolvable:$true] %s544
          %550 = dma.hbm_to_vmem [thread:$0]  %s6, 1024, %s545, [#allocation8], 64, 64, 4
        $region32: #{tpu_custom_call.1} parent=11 // pred_fallthru
          _
        // Predicated region
        $region33: #{tpu_custom_call.1} parent=11 // pred_check
          %p551 = pneg %p225
        $region34: #{tpu_custom_call.1} parent=11 // pred_check_branch
          %553 = sbr.rel (%p551) target = $region36
        $region35: #{tpu_custom_call.1} parent=11 // pred_region
          _
        $region36: #{tpu_custom_call.1} parent=11 // pred_fallthru
          _
        // Predicated region
        $region37: #{tpu_custom_call.1} parent=11 // pred_check
          %p554 = pneg %p246
        $region38: #{tpu_custom_call.1} parent=11 // pred_check_branch
          %556 = sbr.rel (%p554) target = $region40
        $region39: #{tpu_custom_call.1} parent=11 // pred_region
          %s558 = ssub.s32 1024, 1024
          %559 = vsyncadd [#allocation11], %s558
          %s560 = sshll.u32 [#allocation10], 4
          %s561 = int_to_ptr.vmem [resolvable:$true] %s560
          %566 = dma.hbm_to_vmem [thread:$0]  %s8, 1024, %s561, [#allocation11], 64, 64, 4
        $region40: #{tpu_custom_call.1} parent=11 // pred_fallthru
          _
        // Predicated region
        $region41: #{tpu_custom_call.1} parent=11 // pred_check
          %p567 = pneg %p267
        $region42: #{tpu_custom_call.1} parent=11 // pred_check_branch
          %569 = sbr.rel (%p567) target = $region44
        $region43: #{tpu_custom_call.1} parent=11 // pred_region
          _
        $region44: #{tpu_custom_call.1} parent=11 // pred_fallthru
          _
        // Predicated region
        $region45: #{tpu_custom_call.1} parent=11 // pred_check
          %p570 = pneg %p288
        $region46: #{tpu_custom_call.1} parent=11 // pred_check_branch
          %572 = sbr.rel (%p570) target = $region48
        $region47: #{tpu_custom_call.1} parent=11 // pred_region
          _
        $region48: #{tpu_custom_call.1} parent=11 // pred_fallthru
          _
        // Predicated region
        $region49: #{tpu_custom_call.1} parent=11 // pred_check
          %p573 = pneg %p309
        $region50: #{tpu_custom_call.1} parent=11 // pred_check_branch
          %575 = sbr.rel (%p573) target = $region52
        $region51: #{tpu_custom_call.1} parent=11 // pred_region
          _
        $region52: #{tpu_custom_call.1} parent=11 // pred_fallthru
          _
        // Predicated region
        $region53: #{tpu_custom_call.1} parent=11 // pred_check
          %p576 = pneg %p330
        $region54: #{tpu_custom_call.1} parent=11 // pred_check_branch
          %578 = sbr.rel (%p576) target = $region56
        $region55: #{tpu_custom_call.1} parent=11 // pred_region
          _
        $region56: #{tpu_custom_call.1} parent=11 // pred_fallthru
          _
        // Predicated region
        $region57: #{tpu_custom_call.1} parent=11 // pred_check
          %p579 = pneg %p351
        $region58: #{tpu_custom_call.1} parent=11 // pred_check_branch
          %581 = sbr.rel (%p579) target = $region60
        $region59: #{tpu_custom_call.1} parent=11 // pred_region
          _
        $region60: #{tpu_custom_call.1} parent=11 // pred_fallthru
          _
        // Predicated region
        $region61: #{tpu_custom_call.1} parent=11 // pred_check
          %p582 = pneg %p372
        $region62: #{tpu_custom_call.1} parent=11 // pred_check_branch
          %584 = sbr.rel (%p582) target = $region64
        $region63: #{tpu_custom_call.1} parent=11 // pred_region
          %s586 = ssub.s32 2048, 2048
          %587 = vsyncadd [#allocation11], %s586
          %s588 = sshll.u32 [#allocation12], 4
          %s589 = int_to_ptr.vmem [resolvable:$true] %s588
          %594 = dma.hbm_to_vmem [thread:$0]  %s14, 2048, %s589, [#allocation11], 64, 64, 4
        $region64: #{tpu_custom_call.1} parent=11 // pred_fallthru
          _
        // Predicated region
        $region65: #{tpu_custom_call.1} parent=11 // pred_check
          %p595 = pneg %p393
        $region66: #{tpu_custom_call.1} parent=11 // pred_check_branch
          %597 = sbr.rel (%p595) target = $region68
        $region67: #{tpu_custom_call.1} parent=11 // pred_region
          _
        $region68: #{tpu_custom_call.1} parent=11 // pred_fallthru
          _
        // Predicated region
        $region69: #{tpu_custom_call.1} parent=11 // pred_check
          %p598 = pneg %p414
        $region70: #{tpu_custom_call.1} parent=11 // pred_check_branch
          %600 = sbr.rel (%p598) target = $region72
        $region71: #{tpu_custom_call.1} parent=11 // pred_region
          _
        $region72: #{tpu_custom_call.1} parent=11 // pred_fallthru
          _
        // Predicated region
        $region73: #{tpu_custom_call.1} parent=11 // pred_check
          %p601 = pneg %p435
        $region74: #{tpu_custom_call.1} parent=11 // pred_check_branch
          %603 = sbr.rel (%p601) target = $region76
        $region75: #{tpu_custom_call.1} parent=11 // pred_region
          _
        $region76: #{tpu_custom_call.1} parent=11 // pred_fallthru
          _
      $region12: #{tpu_custom_call.1} parent=5 // pred_fallthru
        _
      %p604 = scmp.lt.s32.totalorder %s35, 4
      // Predicated region
      $region77: #{tpu_custom_call.1} parent=5 // pred_check
        %p605 = pneg %p604
      $region78: #{tpu_custom_call.1} parent=5 // pred_check_branch
        %607 = sbr.rel (%p605) target = $region80
      $region79: #{tpu_custom_call.1} parent=5 // pred_region
        // Predicated region
        $region81: #{tpu_custom_call.1} parent=79 // pred_check
          %p608 = pneg %p67
        $region82: #{tpu_custom_call.1} parent=79 // pred_check_branch
          %610 = sbr.rel (%p608) target = $region84
        $region83: #{tpu_custom_call.1} parent=79 // pred_region
          %p611 = scmp.lt.s32.totalorder %s42, 1
          %s612 = scalar_select %p611, %s42, 1
          %s613 = smul.addr %s612, 2
          %s614 = smul.addr %s613, 8
          %s615 = scalar_lea.vmem %s0, %s614
        $region84: #{tpu_custom_call.1} parent=79 // pred_fallthru
          _
        // Predicated region
        $region85: #{tpu_custom_call.1} parent=79 // pred_check
          %p616 = pneg %p93
        $region86: #{tpu_custom_call.1} parent=79 // pred_check_branch
          %618 = sbr.rel (%p616) target = $region88
        $region87: #{tpu_custom_call.1} parent=79 // pred_region
          %p619 = scmp.lt.s32.totalorder %s42, 1
          %s620 = scalar_select %p619, %s42, 1
          %s621 = scalar_lea.vmem %s1, %s620
        $region88: #{tpu_custom_call.1} parent=79 // pred_fallthru
          _
      $region80: #{tpu_custom_call.1} parent=5 // pred_fallthru
        _
      %p622 = scmp.le.s32.totalorder 1, %s35
      %p623 = scmp.lt.s32.totalorder %s35, 5
      %p624 = pnand %p622, %p623
      %p625 = pneg %p624
      // Predicated region
      $region89: #{tpu_custom_call.1} parent=5 // pred_check
        _
      $region90: #{tpu_custom_call.1} parent=5 // pred_check_branch
        %627 = sbr.rel (%p624) target = $region92
      $region91: #{tpu_custom_call.1} parent=5 // pred_region
        %s628 = ssub.s32 %s35, 1
        // Predicated region
        $region93: #{tpu_custom_call.1} parent=91 // pred_check
          %p629 = pneg %p120
        $region94: #{tpu_custom_call.1} parent=91 // pred_check_branch
          %631 = sbr.rel (%p629) target = $region96
        $region95: #{tpu_custom_call.1} parent=91 // pred_region
          %632 = dma.done [#allocation5], 1024
        $region96: #{tpu_custom_call.1} parent=91 // pred_fallthru
          _
        // Predicated region
        $region97: #{tpu_custom_call.1} parent=91 // pred_check
          %p633 = pneg %p162
        $region98: #{tpu_custom_call.1} parent=91 // pred_check_branch
          %635 = sbr.rel (%p633) target = $region100
        $region99: #{tpu_custom_call.1} parent=91 // pred_region
          %636 = dma.done [#allocation8], 1024
        $region100: #{tpu_custom_call.1} parent=91 // pred_fallthru
          _
        // Predicated region
        $region101: #{tpu_custom_call.1} parent=91 // pred_check
          %p637 = pneg %p204
        $region102: #{tpu_custom_call.1} parent=91 // pred_check_branch
          %639 = sbr.rel (%p637) target = $region104
        $region103: #{tpu_custom_call.1} parent=91 // pred_region
          %640 = dma.done [#allocation8], 1024
        $region104: #{tpu_custom_call.1} parent=91 // pred_fallthru
          _
        // Predicated region
        $region105: #{tpu_custom_call.1} parent=91 // pred_check
          %p641 = pneg %p246
        $region106: #{tpu_custom_call.1} parent=91 // pred_check_branch
          %643 = sbr.rel (%p641) target = $region108
        $region107: #{tpu_custom_call.1} parent=91 // pred_region
          %644 = dma.done [#allocation11], 1024
        $region108: #{tpu_custom_call.1} parent=91 // pred_fallthru
          _
        // Predicated region
        $region109: #{tpu_custom_call.1} parent=91 // pred_check
          %p645 = pneg %p372
        $region110: #{tpu_custom_call.1} parent=91 // pred_check_branch
          %647 = sbr.rel (%p645) target = $region112
        $region111: #{tpu_custom_call.1} parent=91 // pred_region
          %648 = dma.done [#allocation11], 2048
        $region112: #{tpu_custom_call.1} parent=91 // pred_fallthru
          _
        %p649 = scmp.lt.s32.totalorder %s44, 1
        %s650 = scalar_select %p649, %s44, 1
        %s651 = smul.addr %s650, 2
        %s652 = smul.addr %s651, 8
        %s653 = scalar_lea.vmem %s0, %s652
        %p654 = pneg %p73
        %p655 = pneg %p70
        %p656 = scmp.lt.s32.totalorder %s44, 1
        %s657 = scalar_select %p656, %s44, 1
        %s658 = scalar_lea.vmem %s1, %s657
        %p659 = pneg %p99
        %p660 = pneg %p96
        %p661 = pneg %p120
        %p662 = pneg %p117
        %p663 = pneg %p141
        %p664 = pneg %p138
        %p665 = pneg %p162
        %p666 = pneg %p159
        %p667 = pneg %p183
        %p668 = pneg %p180
        %p669 = pneg %p204
        %p670 = pneg %p201
        %p671 = pneg %p225
        %p672 = pneg %p222
        %p673 = pneg %p246
        %p674 = pneg %p243
        %p675 = pneg %p267
        %p676 = pneg %p264
        %p677 = pneg %p288
        %p678 = pneg %p285
        %p679 = pneg %p309
        %p680 = pneg %p306
        %p681 = pneg %p330
        %p682 = pneg %p327
        %p683 = pneg %p351
        %p684 = pneg %p348
        %p685 = pneg %p372
        %p686 = pneg %p369
        %p687 = pneg %p393
        %p688 = pneg %p390
        %p689 = pneg %p414
        %p690 = pneg %p411
        %p691 = pneg %p435
        %p692 = pneg %p432
        %p693 = pneg %p463
        %p694 = pneg %p460
        %s695 = sand.u32 %s450, 1
        %s696 = scalar_lea.sflag [#allocation6], %s695
        %s697 = sand.u32 %s450, 1
        %s698 = smul.addr %s697, 8
        %s699 = scalar_lea.vmem [#allocation13], %s698
        %p700 = pneg %p491
        %p701 = pneg %p488
        %s702 = sand.u32 %s478, 1
        %s703 = scalar_lea.sflag [#allocation15], %s702
        %s704 = sand.u32 %s478, 1
        %s705 = smul.addr %s704, 8
        %s706 = scalar_lea.vmem [#allocation14], %s705
        %p707 = scmp.lt.s32.totalorder %s44, 1
        %s708 = scalar_select %p707, %s44, 1
        %s709 = smul.addr %s708, 2
        %s710 = smul.addr %s709, 8
        %s711 = scalar_lea.vmem %s0, %s710
        %p712 = scmp.lt.s32.totalorder %s44, 1
        %s713 = scalar_select %p712, %s44, 1
        %s714 = scalar_lea.vmem %s1, %s713
        %p716 = scmp.eq.s32.totalorder %s45, 0
        // Predicated region
        $region113: #{tpu_custom_call.1} parent=91 // pred_check
          %p717 = pneg %p716
        $region114: #{tpu_custom_call.1} parent=91 // pred_check_branch
          %719 = sbr.rel (%p717) target = $region116
        $region115: #{tpu_custom_call.1} parent=91 // pred_region
          %v720 = vld [vmem:[%s711] sm:$0xff]
          %v721 = vld [vmem:[%s711 + $0x8] sm:$0xff]
          %v722 = vpack.c.bf16 %v721, %v720
          %v723 = vld [vmem:[#allocation7] sm:$0xf]
          %v724 = vld [vmem:[#allocation7 + $0x4] sm:$0xf]
          %v725 = vld [vmem:[#allocation7 + $0x8] sm:$0xf]
          %v726 = vld [vmem:[#allocation7 + $0xc] sm:$0xf]
          %v727 = vld [vmem:[#allocation7 + $0x10] sm:$0xf]
          %v728 = vld [vmem:[#allocation7 + $0x14] sm:$0xf]
          %v729 = vld [vmem:[#allocation7 + $0x18] sm:$0xf]
          %v730 = vld [vmem:[#allocation7 + $0x1c] sm:$0xf]
          %v731 = vld [vmem:[#allocation7 + $0x20] sm:$0xf]
          %v732 = vld [vmem:[#allocation7 + $0x24] sm:$0xf]
          %v733 = vld [vmem:[#allocation7 + $0x28] sm:$0xf]
          %v734 = vld [vmem:[#allocation7 + $0x2c] sm:$0xf]
          %v735 = vld [vmem:[#allocation7 + $0x30] sm:$0xf]
          %v736 = vld [vmem:[#allocation7 + $0x34] sm:$0xf]
          %v737 = vld [vmem:[#allocation7 + $0x38] sm:$0xf]
          %v738 = vld [vmem:[#allocation7 + $0x3c] sm:$0xf]
          %v739 = vld [vmem:[%s5] sm:$0xff]
          %v740 = vld [vmem:[%s5 + $0x8] sm:$0xff]
          %v741 = vld [vmem:[%s5 + $0x10] sm:$0xff]
          %v742 = vld [vmem:[%s5 + $0x18] sm:$0xff]
          %v743 = vld [vmem:[%s5 + $0x20] sm:$0xff]
          %v744 = vld [vmem:[%s5 + $0x28] sm:$0xff]
          %v745 = vld [vmem:[%s5 + $0x30] sm:$0xff]
          %v746 = vld [vmem:[%s5 + $0x38] sm:$0xff]
          %v747 = vld [vmem:[%s5 + $0x40] sm:$0xff]
          %v748 = vld [vmem:[%s5 + $0x48] sm:$0xff]
          %v749 = vld [vmem:[%s5 + $0x50] sm:$0xff]
          %v750 = vld [vmem:[%s5 + $0x58] sm:$0xff]
          %v751 = vld [vmem:[%s5 + $0x60] sm:$0xff]
          %v752 = vld [vmem:[%s5 + $0x68] sm:$0xff]
          %v753 = vld [vmem:[%s5 + $0x70] sm:$0xff]
          %v754 = vld [vmem:[%s5 + $0x78] sm:$0xff]
          %756 = vset.pattern.permute.xlu0 0
          %757 = vperm.xlu0 %756, %v739
          %v758 = vpop.permute.xlu0 %757
          %761 = vset.pattern.permute.xlu0 0
          %762 = vperm.xlu0 %761, %v740
          %v763 = vpop.permute.xlu0 %762
          %766 = vset.pattern.permute.xlu0 0
          %767 = vperm.xlu0 %766, %v741
          %v768 = vpop.permute.xlu0 %767
          %771 = vset.pattern.permute.xlu0 0
          %772 = vperm.xlu0 %771, %v742
          %v773 = vpop.permute.xlu0 %772
          %776 = vset.pattern.permute.xlu0 0
          %777 = vperm.xlu0 %776, %v743
          %v778 = vpop.permute.xlu0 %777
          %781 = vset.pattern.permute.xlu0 0
          %782 = vperm.xlu0 %781, %v744
          %v783 = vpop.permute.xlu0 %782
          %786 = vset.pattern.permute.xlu0 0
          %787 = vperm.xlu0 %786, %v745
          %v788 = vpop.permute.xlu0 %787
          %791 = vset.pattern.permute.xlu0 0
          %792 = vperm.xlu0 %791, %v746
          %v793 = vpop.permute.xlu0 %792
          %796 = vset.pattern.permute.xlu0 0
          %797 = vperm.xlu0 %796, %v747
          %v798 = vpop.permute.xlu0 %797
          %801 = vset.pattern.permute.xlu0 0
          %802 = vperm.xlu0 %801, %v748
          %v803 = vpop.permute.xlu0 %802
          %806 = vset.pattern.permute.xlu0 0
          %807 = vperm.xlu0 %806, %v749
          %v808 = vpop.permute.xlu0 %807
          %811 = vset.pattern.permute.xlu0 0
          %812 = vperm.xlu0 %811, %v750
          %v813 = vpop.permute.xlu0 %812
          %816 = vset.pattern.permute.xlu0 0
          %817 = vperm.xlu0 %816, %v751
          %v818 = vpop.permute.xlu0 %817
          %821 = vset.pattern.permute.xlu0 0
          %822 = vperm.xlu0 %821, %v752
          %v823 = vpop.permute.xlu0 %822
          %826 = vset.pattern.permute.xlu0 0
          %827 = vperm.xlu0 %826, %v753
          %v828 = vpop.permute.xlu0 %827
          %831 = vset.pattern.permute.xlu0 0
          %832 = vperm.xlu0 %831, %v754
          %v833 = vpop.permute.xlu0 %832
          %v851 = vunpack.c.l.b16 %v723
          %v852 = vunpack.c.l.b16 %v724
          %v853 = vunpack.c.l.b16 %v725
          %v854 = vunpack.c.l.b16 %v726
          %v855 = vunpack.c.l.b16 %v727
          %v856 = vunpack.c.l.b16 %v728
          %v857 = vunpack.c.l.b16 %v729
          %v858 = vunpack.c.l.b16 %v730
          %v859 = vunpack.c.l.b16 %v731
          %v860 = vunpack.c.l.b16 %v732
          %v861 = vunpack.c.l.b16 %v733
          %v862 = vunpack.c.l.b16 %v734
          %v863 = vunpack.c.l.b16 %v735
          %v864 = vunpack.c.l.b16 %v736
          %v865 = vunpack.c.l.b16 %v737
          %v866 = vunpack.c.l.b16 %v738
          %v867 = vpack.c.b16 %v852, %v851
          %v868 = vpack.c.b16 %v854, %v853
          %v869 = vpack.c.b16 %v856, %v855
          %v870 = vpack.c.b16 %v858, %v857
          %v871 = vpack.c.b16 %v860, %v859
          %v872 = vpack.c.b16 %v862, %v861
          %v873 = vpack.c.b16 %v864, %v863
          %v874 = vpack.c.b16 %v866, %v865
          %883 = vmatprep.subr.bf16.mxu0 0
          %884 = vmatpush1.bf16.xpose.msra.mxu0 %v722
          %885 = vmatprep.subr.bf16.mxu0 0
          %886 = vmatpush1.bf16.xpose.msra.mxu0 0
          %887 = vmatprep.subr.bf16.mxu0 0
          %888 = vmatpush1.bf16.xpose.msra.mxu0 0
          %889 = vmatprep.subr.bf16.mxu0 0
          %890 = vmatpush1.bf16.xpose.msra.mxu0 0
          %891 = vmatprep.subr.bf16.mxu0 0
          %892 = vmatpush1.bf16.xpose.msra.mxu0 0
          %893 = vmatprep.subr.bf16.mxu0 0
          %894 = vmatpush1.bf16.xpose.msra.mxu0 0
          %895 = vmatprep.subr.bf16.mxu0 0
          %896 = vmatpush1.bf16.xpose.msra.mxu0 0
          %897 = vmatprep.subr.bf16.mxu0 0
          %898 = vmatpush1.bf16.xpose.msra.mxu0 0
          %899 = vmatprep.subr.bf16.mxu0 0
          %900 = vmatpush1.bf16.xpose.msra.mxu0 0
          %901 = vmatprep.subr.bf16.mxu0 0
          %902 = vmatpush1.bf16.xpose.msra.mxu0 0
          %903 = vmatprep.subr.bf16.mxu0 0
          %904 = vmatpush1.bf16.xpose.msra.mxu0 0
          %905 = vmatprep.subr.bf16.mxu0 0
          %906 = vmatpush1.bf16.xpose.msra.mxu0 0
          %907 = vmatprep.subr.bf16.mxu0 0
          %908 = vmatpush1.bf16.xpose.msra.mxu0 0
          %909 = vmatprep.subr.bf16.mxu0 0
          %910 = vmatpush1.bf16.xpose.msra.mxu0 0
          %911 = vmatprep.subr.bf16.mxu0 0
          %912 = vmatpush1.bf16.xpose.msra.mxu0 0
          %913 = vmatprep.subr.bf16.mxu0 0
          %914 = vmatpush1.bf16.xpose.msra.mxu0 0
          %915 = vmatprep.mubr.bf16.mxu0 0
          %916 = vmatmul.mubr.bf16.gmra.mrb[0].mxu0 %v867
          %v917 = vpop.f32.mrb[0].mxu0
          %v918 = vadd.f32 %v758, %v917
          %v919 = vpop.f32.mrb[0].mxu0
          %v920 = vpop.f32.mrb[0].mxu0
          %v921 = vadd.f32 %v763, %v920
          %v922 = vpop.f32.mrb[0].mxu0
          %923 = vmatprep.mubr.bf16.mxu0 0
          %924 = vmatmul.mubr.bf16.gmra.mrb[0].mxu0 %v868
          %v925 = vpop.f32.mrb[0].mxu0
          %v926 = vadd.f32 %v768, %v925
          %v927 = vpop.f32.mrb[0].mxu0
          %v928 = vpop.f32.mrb[0].mxu0
          %v929 = vadd.f32 %v773, %v928
          %v930 = vpop.f32.mrb[0].mxu0
          %931 = vmatprep.mubr.bf16.mxu0 0
          %932 = vmatmul.mubr.bf16.gmra.mrb[0].mxu0 %v869
          %v933 = vpop.f32.mrb[0].mxu0
          %v934 = vadd.f32 %v778, %v933
          %v935 = vpop.f32.mrb[0].mxu0
          %v936 = vpop.f32.mrb[0].mxu0
          %v937 = vadd.f32 %v783, %v936
          %v938 = vpop.f32.mrb[0].mxu0
          %939 = vmatprep.mubr.bf16.mxu0 0
          %940 = vmatmul.mubr.bf16.gmra.mrb[0].mxu0 %v870
          %v941 = vpop.f32.mrb[0].mxu0
          %v942 = vadd.f32 %v788, %v941
          %v943 = vpop.f32.mrb[0].mxu0
          %v944 = vpop.f32.mrb[0].mxu0
          %v945 = vadd.f32 %v793, %v944
          %v946 = vpop.f32.mrb[0].mxu0
          %947 = vmatprep.mubr.bf16.mxu0 0
          %948 = vmatmul.mubr.bf16.gmra.mrb[0].mxu0 %v871
          %v949 = vpop.f32.mrb[0].mxu0
          %v950 = vadd.f32 %v798, %v949
          %v951 = vpop.f32.mrb[0].mxu0
          %v952 = vpop.f32.mrb[0].mxu0
          %v953 = vadd.f32 %v803, %v952
          %v954 = vpop.f32.mrb[0].mxu0
          %955 = vmatprep.mubr.bf16.mxu0 0
          %956 = vmatmul.mubr.bf16.gmra.mrb[0].mxu0 %v872
          %v957 = vpop.f32.mrb[0].mxu0
          %v958 = vadd.f32 %v808, %v957
          %v959 = vpop.f32.mrb[0].mxu0
          %v960 = vpop.f32.mrb[0].mxu0
          %v961 = vadd.f32 %v813, %v960
          %v962 = vpop.f32.mrb[0].mxu0
          %963 = vmatprep.mubr.bf16.mxu0 0
          %964 = vmatmul.mubr.bf16.gmra.mrb[0].mxu0 %v873
          %v965 = vpop.f32.mrb[0].mxu0
          %v966 = vadd.f32 %v818, %v965
          %v967 = vpop.f32.mrb[0].mxu0
          %v968 = vpop.f32.mrb[0].mxu0
          %v969 = vadd.f32 %v823, %v968
          %v970 = vpop.f32.mrb[0].mxu0
          %971 = vmatprep.mubr.bf16.mxu0 0
          %972 = vmatmul.mubr.bf16.gmra.mrb[0].mxu0 %v874
          %v973 = vpop.f32.mrb[0].mxu0
          %v974 = vadd.f32 %v828, %v973
          %v975 = vpop.f32.mrb[0].mxu0
          %v976 = vpop.f32.mrb[0].mxu0
          %v977 = vadd.f32 %v833, %v976
          %v978 = vpop.f32.mrb[0].mxu0
          %979 = vdwg.mxu0
          %v980 = vpack.c.bf16 %v921, %v918
          %v981 = vpack.c.bf16 %v929, %v926
          %v982 = vpack.c.bf16 %v937, %v934
          %v983 = vpack.c.bf16 %v945, %v942
          %v984 = vpack.c.bf16 %v953, %v950
          %v985 = vpack.c.bf16 %v961, %v958
          %v986 = vpack.c.bf16 %v969, %v966
          %v987 = vpack.c.bf16 %v977, %v974
          %vm988 = vcmask 130048
          %989 = vst.msk [vmem:[#allocation2] sm:$0xff] %vm988, %v980
          %990 = vst.msk [vmem:[#allocation2 + $0x8] sm:$0xff] %vm988, %v981
          %991 = vst.msk [vmem:[#allocation2 + $0x10] sm:$0xff] %vm988, %v982
          %992 = vst.msk [vmem:[#allocation2 + $0x18] sm:$0xff] %vm988, %v983
          %993 = vst.msk [vmem:[#allocation2 + $0x20] sm:$0xff] %vm988, %v984
          %994 = vst.msk [vmem:[#allocation2 + $0x28] sm:$0xff] %vm988, %v985
          %995 = vst.msk [vmem:[#allocation2 + $0x30] sm:$0xff] %vm988, %v986
          %996 = vst.msk [vmem:[#allocation2 + $0x38] sm:$0xff] %vm988, %v987
          %v997 = vld [vmem:[#allocation9] sm:$0xf]
          %v998 = vld [vmem:[#allocation9 + $0x4] sm:$0xf]
          %v999 = vld [vmem:[#allocation9 + $0x8] sm:$0xf]
          %v1000 = vld [vmem:[#allocation9 + $0xc] sm:$0xf]
          %v1001 = vld [vmem:[#allocation9 + $0x10] sm:$0xf]
          %v1002 = vld [vmem:[#allocation9 + $0x14] sm:$0xf]
          %v1003 = vld [vmem:[#allocation9 + $0x18] sm:$0xf]
          %v1004 = vld [vmem:[#allocation9 + $0x1c] sm:$0xf]
          %v1005 = vld [vmem:[#allocation9 + $0x20] sm:$0xf]
          %v1006 = vld [vmem:[#allocation9 + $0x24] sm:$0xf]
          %v1007 = vld [vmem:[#allocation9 + $0x28] sm:$0xf]
          %v1008 = vld [vmem:[#allocation9 + $0x2c] sm:$0xf]
          %v1009 = vld [vmem:[#allocation9 + $0x30] sm:$0xf]
          %v1010 = vld [vmem:[#allocation9 + $0x34] sm:$0xf]
          %v1011 = vld [vmem:[#allocation9 + $0x38] sm:$0xf]
          %v1012 = vld [vmem:[#allocation9 + $0x3c] sm:$0xf]
          %v1013 = vld [vmem:[%s7] sm:$0x1]
          %v1015 = vlaneseq
          %v1016 = vshrl.u32 %v1015, 7
          %v1017 = vsub.s32 0, %v1016
          %v1018 = vrot.slane %v1013, %v1017
          %v1036 = vunpack.c.l.b16 %v997
          %v1037 = vunpack.c.l.b16 %v998
          %v1038 = vunpack.c.l.b16 %v999
          %v1039 = vunpack.c.l.b16 %v1000
          %v1040 = vunpack.c.l.b16 %v1001
          %v1041 = vunpack.c.l.b16 %v1002
          %v1042 = vunpack.c.l.b16 %v1003
          %v1043 = vunpack.c.l.b16 %v1004
          %v1044 = vunpack.c.l.b16 %v1005
          %v1045 = vunpack.c.l.b16 %v1006
          %v1046 = vunpack.c.l.b16 %v1007
          %v1047 = vunpack.c.l.b16 %v1008
          %v1048 = vunpack.c.l.b16 %v1009
          %v1049 = vunpack.c.l.b16 %v1010
          %v1050 = vunpack.c.l.b16 %v1011
          %v1051 = vunpack.c.l.b16 %v1012
          %v1052 = vpack.c.b16 %v1037, %v1036
          %v1053 = vpack.c.b16 %v1039, %v1038
          %v1054 = vpack.c.b16 %v1041, %v1040
          %v1055 = vpack.c.b16 %v1043, %v1042
          %v1056 = vpack.c.b16 %v1045, %v1044
          %v1057 = vpack.c.b16 %v1047, %v1046
          %v1058 = vpack.c.b16 %v1049, %v1048
          %v1059 = vpack.c.b16 %v1051, %v1050
          %1068 = vmatprep.subr.bf16.mxu0 0
          %1069 = vmatpush1.bf16.msra.mxu0 %v1052
          %1070 = vmatprep.subr.bf16.mxu0 0
          %1071 = vmatpush1.bf16.msra.mxu0 %v1053
          %1072 = vmatprep.subr.bf16.mxu0 0
          %1073 = vmatpush1.bf16.msra.mxu0 %v1054
          %1074 = vmatprep.subr.bf16.mxu0 0
          %1075 = vmatpush1.bf16.msra.mxu0 %v1055
          %1076 = vmatprep.subr.bf16.mxu0 0
          %1077 = vmatpush1.bf16.msra.mxu0 %v1056
          %1078 = vmatprep.subr.bf16.mxu0 0
          %1079 = vmatpush1.bf16.msra.mxu0 %v1057
          %1080 = vmatprep.subr.bf16.mxu0 0
          %1081 = vmatpush1.bf16.msra.mxu0 %v1058
          %1082 = vmatprep.subr.bf16.mxu0 0
          %1083 = vmatpush1.bf16.msra.mxu0 %v1059
          %1084 = vmatprep.subr.bf16.mxu0 0
          %1085 = vmatpush1.bf16.msra.mxu0 0
          %1086 = vmatprep.subr.bf16.mxu0 0
          %1087 = vmatpush1.bf16.msra.mxu0 0
          %1088 = vmatprep.subr.bf16.mxu0 0
          %1089 = vmatpush1.bf16.msra.mxu0 0
          %1090 = vmatprep.subr.bf16.mxu0 0
          %1091 = vmatpush1.bf16.msra.mxu0 0
          %1092 = vmatprep.subr.bf16.mxu0 0
          %1093 = vmatpush1.bf16.msra.mxu0 0
          %1094 = vmatprep.subr.bf16.mxu0 0
          %1095 = vmatpush1.bf16.msra.mxu0 0
          %1096 = vmatprep.subr.bf16.mxu0 0
          %1097 = vmatpush1.bf16.msra.mxu0 0
          %1098 = vmatprep.subr.bf16.mxu0 0
          %1099 = vmatpush1.bf16.msra.mxu0 0
          %1100 = vmatprep.mubr.bf16.mxu0 0
          %1101 = vmatmul.mubr.bf16.gmra.mrb[0].mxu0 %v722
          %v1102 = vpop.f32.mrb[0].mxu0
          %v1103 = vadd.f32 %v1018, %v1102
          %v1104 = vpop.f32.mrb[0].mxu0
          %v1105 = vpop.f32.mrb[0].mxu0
          %v1106 = vadd.f32 %v1018, %v1105
          %v1107 = vpop.f32.mrb[0].mxu0
          %1108 = vdwg.mxu0
          %v1109 = vpack.c.bf16 %v1106, %v1103
          %1110 = vst [vmem:[#allocation3] sm:$0xff] %v1109
        $region116: #{tpu_custom_call.1} parent=91 // pred_fallthru
          _
        %s1111 = smul.u32 %s45, 8
        %s1112 = scalar_lea.vmem %s711, %s1111
        %v1113 = vld [vmem:[%s1112] sm:$0xff]
        %v1114 = vpack.c.bf16 %v1113, %v1113
        %v1115 = vld [vmem:[#allocation4] sm:$0xf]
        %v1116 = vld [vmem:[#allocation4 + $0x4] sm:$0xf]
        %v1117 = vld [vmem:[#allocation4 + $0x8] sm:$0xf]
        %v1118 = vld [vmem:[#allocation4 + $0xc] sm:$0xf]
        %v1119 = vld [vmem:[#allocation4 + $0x10] sm:$0xf]
        %v1120 = vld [vmem:[#allocation4 + $0x14] sm:$0xf]
        %v1121 = vld [vmem:[#allocation4 + $0x18] sm:$0xf]
        %v1122 = vld [vmem:[#allocation4 + $0x1c] sm:$0xf]
        %v1123 = vld [vmem:[#allocation4 + $0x20] sm:$0xf]
        %v1124 = vld [vmem:[#allocation4 + $0x24] sm:$0xf]
        %v1125 = vld [vmem:[#allocation4 + $0x28] sm:$0xf]
        %v1126 = vld [vmem:[#allocation4 + $0x2c] sm:$0xf]
        %v1127 = vld [vmem:[#allocation4 + $0x30] sm:$0xf]
        %v1128 = vld [vmem:[#allocation4 + $0x34] sm:$0xf]
        %v1129 = vld [vmem:[#allocation4 + $0x38] sm:$0xf]
        %v1130 = vld [vmem:[#allocation4 + $0x3c] sm:$0xf]
        %v1131 = vld [vmem:[%s3] sm:$0x1]
        %v1133 = vlaneseq
        %v1134 = vshrl.u32 %v1133, 7
        %v1135 = vsub.s32 0, %v1134
        %v1136 = vrot.slane %v1131, %v1135
        %v1154 = vunpack.c.l.b16 %v1115
        %v1155 = vunpack.c.l.b16 %v1116
        %v1156 = vunpack.c.l.b16 %v1117
        %v1157 = vunpack.c.l.b16 %v1118
        %v1158 = vunpack.c.l.b16 %v1119
        %v1159 = vunpack.c.l.b16 %v1120
        %v1160 = vunpack.c.l.b16 %v1121
        %v1161 = vunpack.c.l.b16 %v1122
        %v1162 = vunpack.c.l.b16 %v1123
        %v1163 = vunpack.c.l.b16 %v1124
        %v1164 = vunpack.c.l.b16 %v1125
        %v1165 = vunpack.c.l.b16 %v1126
        %v1166 = vunpack.c.l.b16 %v1127
        %v1167 = vunpack.c.l.b16 %v1128
        %v1168 = vunpack.c.l.b16 %v1129
        %v1169 = vunpack.c.l.b16 %v1130
        %v1170 = vpack.c.b16 %v1155, %v1154
        %v1171 = vpack.c.b16 %v1157, %v1156
        %v1172 = vpack.c.b16 %v1159, %v1158
        %v1173 = vpack.c.b16 %v1161, %v1160
        %v1174 = vpack.c.b16 %v1163, %v1162
        %v1175 = vpack.c.b16 %v1165, %v1164
        %v1176 = vpack.c.b16 %v1167, %v1166
        %v1177 = vpack.c.b16 %v1169, %v1168
        %1186 = vmatprep.subr.bf16.mxu0 0
        %1187 = vmatpush1.bf16.msra.mxu0 %v1170
        %1188 = vmatprep.subr.bf16.mxu0 0
        %1189 = vmatpush1.bf16.msra.mxu0 %v1171
        %1190 = vmatprep.subr.bf16.mxu0 0
        %1191 = vmatpush1.bf16.msra.mxu0 %v1172
        %1192 = vmatprep.subr.bf16.mxu0 0
        %1193 = vmatpush1.bf16.msra.mxu0 %v1173
        %1194 = vmatprep.subr.bf16.mxu0 0
        %1195 = vmatpush1.bf16.msra.mxu0 %v1174
        %1196 = vmatprep.subr.bf16.mxu0 0
        %1197 = vmatpush1.bf16.msra.mxu0 %v1175
        %1198 = vmatprep.subr.bf16.mxu0 0
        %1199 = vmatpush1.bf16.msra.mxu0 %v1176
        %1200 = vmatprep.subr.bf16.mxu0 0
        %1201 = vmatpush1.bf16.msra.mxu0 %v1177
        %1202 = vmatprep.subr.bf16.mxu0 0
        %1203 = vmatpush1.bf16.msra.mxu0 0
        %1204 = vmatprep.subr.bf16.mxu0 0
        %1205 = vmatpush1.bf16.msra.mxu0 0
        %1206 = vmatprep.subr.bf16.mxu0 0
        %1207 = vmatpush1.bf16.msra.mxu0 0
        %1208 = vmatprep.subr.bf16.mxu0 0
        %1209 = vmatpush1.bf16.msra.mxu0 0
        %1210 = vmatprep.subr.bf16.mxu0 0
        %1211 = vmatpush1.bf16.msra.mxu0 0
        %1212 = vmatprep.subr.bf16.mxu0 0
        %1213 = vmatpush1.bf16.msra.mxu0 0
        %1214 = vmatprep.subr.bf16.mxu0 0
        %1215 = vmatpush1.bf16.msra.mxu0 0
        %1216 = vmatprep.subr.bf16.mxu0 0
        %1217 = vmatpush1.bf16.msra.mxu0 0
        %1218 = vmatprep.mubr.bf16.mxu0 0
        %1219 = vmatmul.mubr.bf16.gmra.mrb[0].mxu0 %v1114
        %v1220 = vpop.f32.mrb[0].mxu0
        %v1221 = vadd.f32 %v1136, %v1220
        %v1222 = vpop.f32.mrb[0].mxu0
        %v1223 = vpop.f32.mrb[0].mxu0
        %v1224 = vpop.f32.mrb[0].mxu0
        %1225 = vdwg.mxu0
        %v1226 = vpack.c.bf16 %v1221, %v1221
        %v1227 = vld [vmem:[%s714] sm:$0x1]
        %v1229 = vlaneseq
        %v1230 = vshrl.u32 %v1229, 7
        %v1231 = vsub.s32 0, %v1230
        %v1232 = vrot.slane %v1227, %v1231
        %v1234 = vld [vmem:[#allocation2] sm:$0xff]
        %v1235 = vld [vmem:[#allocation2 + $0x8] sm:$0xff]
        %vm1236 = vcmask 261120
        %v1238 = vsel %vm1236, %v1226, 0
        %1240 = vmatprep.subr.bf16.mxu0 0
        %1241 = vmatpush1.bf16.msra.mxu0 %v1234
        %1242 = vmatprep.subr.bf16.mxu0 0
        %1243 = vmatpush1.bf16.msra.mxu0 %v1235
        %1244 = vmatprep.subr.bf16.mxu0 0
        %1245 = vmatpush1.bf16.msra.mxu0 0
        %1246 = vmatprep.subr.bf16.mxu0 0
        %1247 = vmatpush1.bf16.msra.mxu0 0
        %1248 = vmatprep.subr.bf16.mxu0 0
        %1249 = vmatpush1.bf16.msra.mxu0 0
        %1250 = vmatprep.subr.bf16.mxu0 0
        %1251 = vmatpush1.bf16.msra.mxu0 0
        %1252 = vmatprep.subr.bf16.mxu0 0
        %1253 = vmatpush1.bf16.msra.mxu0 0
        %1254 = vmatprep.subr.bf16.mxu0 0
        %1255 = vmatpush1.bf16.msra.mxu0 0
        %1256 = vmatprep.subr.bf16.mxu0 0
        %1257 = vmatpush1.bf16.msra.mxu0 0
        %1258 = vmatprep.subr.bf16.mxu0 0
        %1259 = vmatpush1.bf16.msra.mxu0 0
        %1260 = vmatprep.subr.bf16.mxu0 0
        %1261 = vmatpush1.bf16.msra.mxu0 0
        %1262 = vmatprep.subr.bf16.mxu0 0
        %1263 = vmatpush1.bf16.msra.mxu0 0
        %1264 = vmatprep.subr.bf16.mxu0 0
        %1265 = vmatpush1.bf16.msra.mxu0 0
        %1266 = vmatprep.subr.bf16.mxu0 0
        %1267 = vmatpush1.bf16.msra.mxu0 0
        %1268 = vmatprep.subr.bf16.mxu0 0
        %1269 = vmatpush1.bf16.msra.mxu0 0
        %1270 = vmatprep.subr.bf16.mxu0 0
        %1271 = vmatpush1.bf16.msra.mxu0 0
        %1272 = vmatprep.mubr.bf16.mxu0 0
        %1273 = vmatmul.mubr.bf16.gmra.mrb[0].mxu0 %v1238
        %v1274 = vpop.f32.mrb[0].mxu0
        %v1275 = vadd.f32 %v1232, %v1274
        %v1276 = vpop.f32.mrb[0].mxu0
        %v1277 = vpop.f32.mrb[0].mxu0
        %v1278 = vpop.f32.mrb[0].mxu0
        %1279 = vdwg.mxu0
        %vm1280 = vcmask 130048
        %v1281 = vsel %vm1280, %v1275, -inf
        %1282 = vmax.xlane.f32.xlu0 %v1281
        %v1283 = vpop.xlane.xlu0 %1282
        %v1284 = vsub.f32 %v1275, %v1283
        %v1285 = vmul.f32 %v1284, 1.442695
        %v1286 = vpow.pop %v1285
        %v1287 = vsel %vm1280, %v1286, 0.0
        %1288 = vadd.xlane.f32.xlu0 %v1287
        %v1289 = vpop.xlane.xlu0 %1288
        %v1290 = vrcp.pop %v1289
        %v1291 = vmul.f32 %v1286, %v1290
        %v1292 = vrcp.pop %v1289
        %v1293 = vmul.f32 1.0, %v1292
        %v1294 = vmul.f32 %v1286, %v1293
        %v1295 = vadd.f32 %v1294, 0.0
        %v1296 = vpack.c.bf16 %v1291, %v1291
        %v1297 = vld [vmem:[#allocation3] sm:$0xff]
        %v1299 = vsel %vm1280, %v1296, 0
        %1301 = vmatprep.subr.bf16.mxu0 0
        %1302 = vmatpush1.bf16.msra.mxu0 %v1297
        %1303 = vmatprep.subr.bf16.mxu0 0
        %1304 = vmatpush1.bf16.msra.mxu0 0
        %1305 = vmatprep.subr.bf16.mxu0 0
        %1306 = vmatpush1.bf16.msra.mxu0 0
        %1307 = vmatprep.subr.bf16.mxu0 0
        %1308 = vmatpush1.bf16.msra.mxu0 0
        %1309 = vmatprep.subr.bf16.mxu0 0
        %1310 = vmatpush1.bf16.msra.mxu0 0
        %1311 = vmatprep.subr.bf16.mxu0 0
        %1312 = vmatpush1.bf16.msra.mxu0 0
        %1313 = vmatprep.subr.bf16.mxu0 0
        %1314 = vmatpush1.bf16.msra.mxu0 0
        %1315 = vmatprep.subr.bf16.mxu0 0
        %1316 = vmatpush1.bf16.msra.mxu0 0
        %1317 = vmatprep.subr.bf16.mxu0 0
        %1318 = vmatpush1.bf16.msra.mxu0 0
        %1319 = vmatprep.subr.bf16.mxu0 0
        %1320 = vmatpush1.bf16.msra.mxu0 0
        %1321 = vmatprep.subr.bf16.mxu0 0
        %1322 = vmatpush1.bf16.msra.mxu0 0
        %1323 = vmatprep.subr.bf16.mxu0 0
        %1324 = vmatpush1.bf16.msra.mxu0 0
        %1325 = vmatprep.subr.bf16.mxu0 0
        %1326 = vmatpush1.bf16.msra.mxu0 0
        %1327 = vmatprep.subr.bf16.mxu0 0
        %1328 = vmatpush1.bf16.msra.mxu0 0
        %1329 = vmatprep.subr.bf16.mxu0 0
        %1330 = vmatpush1.bf16.msra.mxu0 0
        %1331 = vmatprep.subr.bf16.mxu0 0
        %1332 = vmatpush1.bf16.msra.mxu0 0
        %1333 = vmatprep.mubr.bf16.mxu0 0
        %1334 = vmatmul.mubr.bf16.gmra.mrb[0].mxu0 %v1299
        %v1335 = vpop.f32.mrb[0].mxu0
        %v1336 = vadd.f32 0.0, %v1335
        %v1337 = vpop.f32.mrb[0].mxu0
        %v1338 = vpop.f32.mrb[0].mxu0
        %v1339 = vpop.f32.mrb[0].mxu0
        %1340 = vdwg.mxu0
        %v1341 = vld [vmem:[#allocation2 + $0x10] sm:$0xff]
        %v1342 = vld [vmem:[#allocation2 + $0x18] sm:$0xff]
        %1344 = vrot.lane.b32.xlu0 %v1226, 96
        %v1345 = vpop.permute.xlu0 %1344
        %v1347 = vsel %vm1236, %v1345, 0
        %1349 = vmatprep.subr.bf16.mxu0 0
        %1350 = vmatpush1.bf16.msra.mxu0 %v1341
        %1351 = vmatprep.subr.bf16.mxu0 0
        %1352 = vmatpush1.bf16.msra.mxu0 %v1342
        %1353 = vmatprep.subr.bf16.mxu0 0
        %1354 = vmatpush1.bf16.msra.mxu0 0
        %1355 = vmatprep.subr.bf16.mxu0 0
        %1356 = vmatpush1.bf16.msra.mxu0 0
        %1357 = vmatprep.subr.bf16.mxu0 0
        %1358 = vmatpush1.bf16.msra.mxu0 0
        %1359 = vmatprep.subr.bf16.mxu0 0
        %1360 = vmatpush1.bf16.msra.mxu0 0
        %1361 = vmatprep.subr.bf16.mxu0 0
        %1362 = vmatpush1.bf16.msra.mxu0 0
        %1363 = vmatprep.subr.bf16.mxu0 0
        %1364 = vmatpush1.bf16.msra.mxu0 0
        %1365 = vmatprep.subr.bf16.mxu0 0
        %1366 = vmatpush1.bf16.msra.mxu0 0
        %1367 = vmatprep.subr.bf16.mxu0 0
        %1368 = vmatpush1.bf16.msra.mxu0 0
        %1369 = vmatprep.subr.bf16.mxu0 0
        %1370 = vmatpush1.bf16.msra.mxu0 0
        %1371 = vmatprep.subr.bf16.mxu0 0
        %1372 = vmatpush1.bf16.msra.mxu0 0
        %1373 = vmatprep.subr.bf16.mxu0 0
        %1374 = vmatpush1.bf16.msra.mxu0 0
        %1375 = vmatprep.subr.bf16.mxu0 0
        %1376 = vmatpush1.bf16.msra.mxu0 0
        %1377 = vmatprep.subr.bf16.mxu0 0
        %1378 = vmatpush1.bf16.msra.mxu0 0
        %1379 = vmatprep.subr.bf16.mxu0 0
        %1380 = vmatpush1.bf16.msra.mxu0 0
        %1381 = vmatprep.mubr.bf16.mxu0 0
        %1382 = vmatmul.mubr.bf16.gmra.mrb[0].mxu0 %v1347
        %v1383 = vpop.f32.mrb[0].mxu0
        %v1384 = vadd.f32 %v1232, %v1383
        %v1385 = vpop.f32.mrb[0].mxu0
        %v1386 = vpop.f32.mrb[0].mxu0
        %v1387 = vpop.f32.mrb[0].mxu0
        %1388 = vdwg.mxu0
        %v1389 = vsel %vm1280, %v1384, -inf
        %1390 = vmax.xlane.f32.xlu0 %v1389
        %v1391 = vpop.xlane.xlu0 %1390
        %v1392 = vsub.f32 %v1384, %v1391
        %v1393 = vmul.f32 %v1392, 1.442695
        %v1394 = vpow.pop %v1393
        %v1395 = vsel %vm1280, %v1394, 0.0
        %1396 = vadd.xlane.f32.xlu0 %v1395
        %v1397 = vpop.xlane.xlu0 %1396
        %v1398 = vrcp.pop %v1397
        %v1399 = vmul.f32 %v1394, %v1398
        %v1400 = vrcp.pop %v1397
        %v1401 = vmul.f32 1.0, %v1400
        %v1402 = vmul.f32 %v1394, %v1401
        %v1403 = vadd.f32 %v1295, %v1402
        %v1404 = vpack.c.bf16 %v1399, %v1399
        %1406 = vrot.lane.b32.xlu0 %v1297, 96
        %v1407 = vpop.permute.xlu0 %1406
        %v1410 = vsel %vm1280, %v1404, 0
        %1412 = vmatprep.subr.bf16.mxu0 0
        %1413 = vmatpush1.bf16.msra.mxu0 %v1407
        %1414 = vmatprep.subr.bf16.mxu0 0
        %1415 = vmatpush1.bf16.msra.mxu0 0
        %1416 = vmatprep.subr.bf16.mxu0 0
        %1417 = vmatpush1.bf16.msra.mxu0 0
        %1418 = vmatprep.subr.bf16.mxu0 0
        %1419 = vmatpush1.bf16.msra.mxu0 0
        %1420 = vmatprep.subr.bf16.mxu0 0
        %1421 = vmatpush1.bf16.msra.mxu0 0
        %1422 = vmatprep.subr.bf16.mxu0 0
        %1423 = vmatpush1.bf16.msra.mxu0 0
        %1424 = vmatprep.subr.bf16.mxu0 0
        %1425 = vmatpush1.bf16.msra.mxu0 0
        %1426 = vmatprep.subr.bf16.mxu0 0
        %1427 = vmatpush1.bf16.msra.mxu0 0
        %1428 = vmatprep.subr.bf16.mxu0 0
        %1429 = vmatpush1.bf16.msra.mxu0 0
        %1430 = vmatprep.subr.bf16.mxu0 0
        %1431 = vmatpush1.bf16.msra.mxu0 0
        %1432 = vmatprep.subr.bf16.mxu0 0
        %1433 = vmatpush1.bf16.msra.mxu0 0
        %1434 = vmatprep.subr.bf16.mxu0 0
        %1435 = vmatpush1.bf16.msra.mxu0 0
        %1436 = vmatprep.subr.bf16.mxu0 0
        %1437 = vmatpush1.bf16.msra.mxu0 0
        %1438 = vmatprep.subr.bf16.mxu0 0
        %1439 = vmatpush1.bf16.msra.mxu0 0
        %1440 = vmatprep.subr.bf16.mxu0 0
        %1441 = vmatpush1.bf16.msra.mxu0 0
        %1442 = vmatprep.subr.bf16.mxu0 0
        %1443 = vmatpush1.bf16.msra.mxu0 0
        %1444 = vmatprep.mubr.bf16.mxu0 0
        %1445 = vmatmul.mubr.bf16.gmra.mrb[0].mxu0 %v1410
        %v1446 = vpop.f32.mrb[0].mxu0
        %v1447 = vadd.f32 0.0, %v1446
        %v1448 = vpop.f32.mrb[0].mxu0
        %v1449 = vpop.f32.mrb[0].mxu0
        %v1450 = vpop.f32.mrb[0].mxu0
        %1451 = vdwg.mxu0
        %v1452 = vld [vmem:[#allocation2 + $0x20] sm:$0xff]
        %v1453 = vld [vmem:[#allocation2 + $0x28] sm:$0xff]
        %1454 = vrot.lane.b32.xlu0 %v1226, 64
        %v1455 = vpop.permute.xlu0 %1454
        %v1457 = vsel %vm1236, %v1455, 0
        %1459 = vmatprep.subr.bf16.mxu0 0
        %1460 = vmatpush1.bf16.msra.mxu0 %v1452
        %1461 = vmatprep.subr.bf16.mxu0 0
        %1462 = vmatpush1.bf16.msra.mxu0 %v1453
        %1463 = vmatprep.subr.bf16.mxu0 0
        %1464 = vmatpush1.bf16.msra.mxu0 0
        %1465 = vmatprep.subr.bf16.mxu0 0
        %1466 = vmatpush1.bf16.msra.mxu0 0
        %1467 = vmatprep.subr.bf16.mxu0 0
        %1468 = vmatpush1.bf16.msra.mxu0 0
        %1469 = vmatprep.subr.bf16.mxu0 0
        %1470 = vmatpush1.bf16.msra.mxu0 0
        %1471 = vmatprep.subr.bf16.mxu0 0
        %1472 = vmatpush1.bf16.msra.mxu0 0
        %1473 = vmatprep.subr.bf16.mxu0 0
        %1474 = vmatpush1.bf16.msra.mxu0 0
        %1475 = vmatprep.subr.bf16.mxu0 0
        %1476 = vmatpush1.bf16.msra.mxu0 0
        %1477 = vmatprep.subr.bf16.mxu0 0
        %1478 = vmatpush1.bf16.msra.mxu0 0
        %1479 = vmatprep.subr.bf16.mxu0 0
        %1480 = vmatpush1.bf16.msra.mxu0 0
        %1481 = vmatprep.subr.bf16.mxu0 0
        %1482 = vmatpush1.bf16.msra.mxu0 0
        %1483 = vmatprep.subr.bf16.mxu0 0
        %1484 = vmatpush1.bf16.msra.mxu0 0
        %1485 = vmatprep.subr.bf16.mxu0 0
        %1486 = vmatpush1.bf16.msra.mxu0 0
        %1487 = vmatprep.subr.bf16.mxu0 0
        %1488 = vmatpush1.bf16.msra.mxu0 0
        %1489 = vmatprep.subr.bf16.mxu0 0
        %1490 = vmatpush1.bf16.msra.mxu0 0
        %1491 = vmatprep.mubr.bf16.mxu0 0
        %1492 = vmatmul.mubr.bf16.gmra.mrb[0].mxu0 %v1457
        %v1493 = vpop.f32.mrb[0].mxu0
        %v1494 = vadd.f32 %v1232, %v1493
        %v1495 = vpop.f32.mrb[0].mxu0
        %v1496 = vpop.f32.mrb[0].mxu0
        %v1497 = vpop.f32.mrb[0].mxu0
        %1498 = vdwg.mxu0
        %v1499 = vsel %vm1280, %v1494, -inf
        %1500 = vmax.xlane.f32.xlu0 %v1499
        %v1501 = vpop.xlane.xlu0 %1500
        %v1502 = vsub.f32 %v1494, %v1501
        %v1503 = vmul.f32 %v1502, 1.442695
        %v1504 = vpow.pop %v1503
        %v1505 = vsel %vm1280, %v1504, 0.0
        %1506 = vadd.xlane.f32.xlu0 %v1505
        %v1507 = vpop.xlane.xlu0 %1506
        %v1508 = vrcp.pop %v1507
        %v1509 = vmul.f32 %v1504, %v1508
        %v1510 = vrcp.pop %v1507
        %v1511 = vmul.f32 1.0, %v1510
        %v1512 = vmul.f32 %v1504, %v1511
        %v1513 = vadd.f32 %v1403, %v1512
        %v1514 = vpack.c.bf16 %v1509, %v1509
        %1515 = vrot.lane.b32.xlu0 %v1297, 64
        %v1516 = vpop.permute.xlu0 %1515
        %v1519 = vsel %vm1280, %v1514, 0
        %1521 = vmatprep.subr.bf16.mxu0 0
        %1522 = vmatpush1.bf16.msra.mxu0 %v1516
        %1523 = vmatprep.subr.bf16.mxu0 0
        %1524 = vmatpush1.bf16.msra.mxu0 0
        %1525 = vmatprep.subr.bf16.mxu0 0
        %1526 = vmatpush1.bf16.msra.mxu0 0
        %1527 = vmatprep.subr.bf16.mxu0 0
        %1528 = vmatpush1.bf16.msra.mxu0 0
        %1529 = vmatprep.subr.bf16.mxu0 0
        %1530 = vmatpush1.bf16.msra.mxu0 0
        %1531 = vmatprep.subr.bf16.mxu0 0
        %1532 = vmatpush1.bf16.msra.mxu0 0
        %1533 = vmatprep.subr.bf16.mxu0 0
        %1534 = vmatpush1.bf16.msra.mxu0 0
        %1535 = vmatprep.subr.bf16.mxu0 0
        %1536 = vmatpush1.bf16.msra.mxu0 0
        %1537 = vmatprep.subr.bf16.mxu0 0
        %1538 = vmatpush1.bf16.msra.mxu0 0
        %1539 = vmatprep.subr.bf16.mxu0 0
        %1540 = vmatpush1.bf16.msra.mxu0 0
        %1541 = vmatprep.subr.bf16.mxu0 0
        %1542 = vmatpush1.bf16.msra.mxu0 0
        %1543 = vmatprep.subr.bf16.mxu0 0
        %1544 = vmatpush1.bf16.msra.mxu0 0
        %1545 = vmatprep.subr.bf16.mxu0 0
        %1546 = vmatpush1.bf16.msra.mxu0 0
        %1547 = vmatprep.subr.bf16.mxu0 0
        %1548 = vmatpush1.bf16.msra.mxu0 0
        %1549 = vmatprep.subr.bf16.mxu0 0
        %1550 = vmatpush1.bf16.msra.mxu0 0
        %1551 = vmatprep.subr.bf16.mxu0 0
        %1552 = vmatpush1.bf16.msra.mxu0 0
        %1553 = vmatprep.mubr.bf16.mxu0 0
        %1554 = vmatmul.mubr.bf16.gmra.mrb[0].mxu0 %v1519
        %v1555 = vpop.f32.mrb[0].mxu0
        %v1556 = vadd.f32 0.0, %v1555
        %v1557 = vpop.f32.mrb[0].mxu0
        %v1558 = vpop.f32.mrb[0].mxu0
        %v1559 = vpop.f32.mrb[0].mxu0
        %1560 = vdwg.mxu0
        %v1561 = vld [vmem:[#allocation2 + $0x30] sm:$0xff]
        %v1562 = vld [vmem:[#allocation2 + $0x38] sm:$0xff]
        %1563 = vrot.lane.b32.xlu0 %v1226, 32
        %v1564 = vpop.permute.xlu0 %1563
        %v1566 = vsel %vm1236, %v1564, 0
        %1568 = vmatprep.subr.bf16.mxu0 0
        %1569 = vmatpush1.bf16.msra.mxu0 %v1561
        %1570 = vmatprep.subr.bf16.mxu0 0
        %1571 = vmatpush1.bf16.msra.mxu0 %v1562
        %1572 = vmatprep.subr.bf16.mxu0 0
        %1573 = vmatpush1.bf16.msra.mxu0 0
        %1574 = vmatprep.subr.bf16.mxu0 0
        %1575 = vmatpush1.bf16.msra.mxu0 0
        %1576 = vmatprep.subr.bf16.mxu0 0
        %1577 = vmatpush1.bf16.msra.mxu0 0
        %1578 = vmatprep.subr.bf16.mxu0 0
        %1579 = vmatpush1.bf16.msra.mxu0 0
        %1580 = vmatprep.subr.bf16.mxu0 0
        %1581 = vmatpush1.bf16.msra.mxu0 0
        %1582 = vmatprep.subr.bf16.mxu0 0
        %1583 = vmatpush1.bf16.msra.mxu0 0
        %1584 = vmatprep.subr.bf16.mxu0 0
        %1585 = vmatpush1.bf16.msra.mxu0 0
        %1586 = vmatprep.subr.bf16.mxu0 0
        %1587 = vmatpush1.bf16.msra.mxu0 0
        %1588 = vmatprep.subr.bf16.mxu0 0
        %1589 = vmatpush1.bf16.msra.mxu0 0
        %1590 = vmatprep.subr.bf16.mxu0 0
        %1591 = vmatpush1.bf16.msra.mxu0 0
        %1592 = vmatprep.subr.bf16.mxu0 0
        %1593 = vmatpush1.bf16.msra.mxu0 0
        %1594 = vmatprep.subr.bf16.mxu0 0
        %1595 = vmatpush1.bf16.msra.mxu0 0
        %1596 = vmatprep.subr.bf16.mxu0 0
        %1597 = vmatpush1.bf16.msra.mxu0 0
        %1598 = vmatprep.subr.bf16.mxu0 0
        %1599 = vmatpush1.bf16.msra.mxu0 0
        %1600 = vmatprep.mubr.bf16.mxu0 0
        %1601 = vmatmul.mubr.bf16.gmra.mrb[0].mxu0 %v1566
        %v1602 = vpop.f32.mrb[0].mxu0
        %v1603 = vadd.f32 %v1232, %v1602
        %v1604 = vpop.f32.mrb[0].mxu0
        %v1605 = vpop.f32.mrb[0].mxu0
        %v1606 = vpop.f32.mrb[0].mxu0
        %1607 = vdwg.mxu0
        %v1608 = vsel %vm1280, %v1603, -inf
        %1609 = vmax.xlane.f32.xlu0 %v1608
        %v1610 = vpop.xlane.xlu0 %1609
        %v1611 = vsub.f32 %v1603, %v1610
        %v1612 = vmul.f32 %v1611, 1.442695
        %v1613 = vpow.pop %v1612
        %v1614 = vsel %vm1280, %v1613, 0.0
        %1615 = vadd.xlane.f32.xlu0 %v1614
        %v1616 = vpop.xlane.xlu0 %1615
        %v1617 = vrcp.pop %v1616
        %v1618 = vmul.f32 %v1613, %v1617
        %v1619 = vrcp.pop %v1616
        %v1620 = vmul.f32 1.0, %v1619
        %v1621 = vmul.f32 %v1613, %v1620
        %v1622 = vadd.f32 %v1513, %v1621
        %v1623 = vpack.c.bf16 %v1618, %v1618
        %1624 = vrot.lane.b32.xlu0 %v1297, 32
        %v1625 = vpop.permute.xlu0 %1624
        %v1628 = vsel %vm1280, %v1623, 0
        %1630 = vmatprep.subr.bf16.mxu0 0
        %1631 = vmatpush1.bf16.msra.mxu0 %v1625
        %1632 = vmatprep.subr.bf16.mxu0 0
        %1633 = vmatpush1.bf16.msra.mxu0 0
        %1634 = vmatprep.subr.bf16.mxu0 0
        %1635 = vmatpush1.bf16.msra.mxu0 0
        %1636 = vmatprep.subr.bf16.mxu0 0
        %1637 = vmatpush1.bf16.msra.mxu0 0
        %1638 = vmatprep.subr.bf16.mxu0 0
        %1639 = vmatpush1.bf16.msra.mxu0 0
        %1640 = vmatprep.subr.bf16.mxu0 0
        %1641 = vmatpush1.bf16.msra.mxu0 0
        %1642 = vmatprep.subr.bf16.mxu0 0
        %1643 = vmatpush1.bf16.msra.mxu0 0
        %1644 = vmatprep.subr.bf16.mxu0 0
        %1645 = vmatpush1.bf16.msra.mxu0 0
        %1646 = vmatprep.subr.bf16.mxu0 0
        %1647 = vmatpush1.bf16.msra.mxu0 0
        %1648 = vmatprep.subr.bf16.mxu0 0
        %1649 = vmatpush1.bf16.msra.mxu0 0
        %1650 = vmatprep.subr.bf16.mxu0 0
        %1651 = vmatpush1.bf16.msra.mxu0 0
        %1652 = vmatprep.subr.bf16.mxu0 0
        %1653 = vmatpush1.bf16.msra.mxu0 0
        %1654 = vmatprep.subr.bf16.mxu0 0
        %1655 = vmatpush1.bf16.msra.mxu0 0
        %1656 = vmatprep.subr.bf16.mxu0 0
        %1657 = vmatpush1.bf16.msra.mxu0 0
        %1658 = vmatprep.subr.bf16.mxu0 0
        %1659 = vmatpush1.bf16.msra.mxu0 0
        %1660 = vmatprep.subr.bf16.mxu0 0
        %1661 = vmatpush1.bf16.msra.mxu0 0
        %1662 = vmatprep.mubr.bf16.mxu0 0
        %1663 = vmatmul.mubr.bf16.gmra.mrb[0].mxu0 %v1628
        %v1664 = vpop.f32.mrb[0].mxu0
        %v1665 = vadd.f32 0.0, %v1664
        %v1666 = vpop.f32.mrb[0].mxu0
        %v1667 = vpop.f32.mrb[0].mxu0
        %v1668 = vpop.f32.mrb[0].mxu0
        %1669 = vdwg.mxu0
        %v1670 = vmul.f32 %v1622, 0.25
        %1671 = vst.msk [vmem:[%s706] sm:$0xff] %vm1280, %v1670
        %1673 = vrot.lane.b32.xlu0 %v1447, 32
        %v1674 = vpop.permute.xlu0 %1673
        %1677 = vrot.lane.b32.xlu0 %v1556, 64
        %v1678 = vpop.permute.xlu0 %1677
        %1681 = vrot.lane.b32.xlu0 %v1665, 96
        %v1682 = vpop.permute.xlu0 %1681
        %v1684 = vsel %vm1236, %v1336, %v1674
        %vm1685 = vcmask 523264
        %v1686 = vsel %vm1685, %v1684, %v1678
        %vm1687 = vcmask 785408
        %v1688 = vsel %vm1687, %v1686, %v1682
        %v1689 = vpack.c.bf16 %v1688, %v1688
        %v1690 = vld [vmem:[#allocation10] sm:$0xf]
        %v1691 = vld [vmem:[#allocation10 + $0x4] sm:$0xf]
        %v1692 = vld [vmem:[#allocation10 + $0x8] sm:$0xf]
        %v1693 = vld [vmem:[#allocation10 + $0xc] sm:$0xf]
        %v1694 = vld [vmem:[#allocation10 + $0x10] sm:$0xf]
        %v1695 = vld [vmem:[#allocation10 + $0x14] sm:$0xf]
        %v1696 = vld [vmem:[#allocation10 + $0x18] sm:$0xf]
        %v1697 = vld [vmem:[#allocation10 + $0x1c] sm:$0xf]
        %v1698 = vld [vmem:[#allocation10 + $0x20] sm:$0xf]
        %v1699 = vld [vmem:[#allocation10 + $0x24] sm:$0xf]
        %v1700 = vld [vmem:[#allocation10 + $0x28] sm:$0xf]
        %v1701 = vld [vmem:[#allocation10 + $0x2c] sm:$0xf]
        %v1702 = vld [vmem:[#allocation10 + $0x30] sm:$0xf]
        %v1703 = vld [vmem:[#allocation10 + $0x34] sm:$0xf]
        %v1704 = vld [vmem:[#allocation10 + $0x38] sm:$0xf]
        %v1705 = vld [vmem:[#allocation10 + $0x3c] sm:$0xf]
        %v1722 = vunpack.c.l.b16 %v1690
        %v1723 = vunpack.c.l.b16 %v1691
        %v1724 = vunpack.c.l.b16 %v1692
        %v1725 = vunpack.c.l.b16 %v1693
        %v1726 = vunpack.c.l.b16 %v1694
        %v1727 = vunpack.c.l.b16 %v1695
        %v1728 = vunpack.c.l.b16 %v1696
        %v1729 = vunpack.c.l.b16 %v1697
        %v1730 = vunpack.c.l.b16 %v1698
        %v1731 = vunpack.c.l.b16 %v1699
        %v1732 = vunpack.c.l.b16 %v1700
        %v1733 = vunpack.c.l.b16 %v1701
        %v1734 = vunpack.c.l.b16 %v1702
        %v1735 = vunpack.c.l.b16 %v1703
        %v1736 = vunpack.c.l.b16 %v1704
        %v1737 = vunpack.c.l.b16 %v1705
        %v1738 = vpack.c.b16 %v1723, %v1722
        %v1739 = vpack.c.b16 %v1725, %v1724
        %v1740 = vpack.c.b16 %v1727, %v1726
        %v1741 = vpack.c.b16 %v1729, %v1728
        %v1742 = vpack.c.b16 %v1731, %v1730
        %v1743 = vpack.c.b16 %v1733, %v1732
        %v1744 = vpack.c.b16 %v1735, %v1734
        %v1745 = vpack.c.b16 %v1737, %v1736
        %1754 = vmatprep.subr.bf16.mxu0 0
        %1755 = vmatpush1.bf16.msra.mxu0 %v1738
        %1756 = vmatprep.subr.bf16.mxu0 0
        %1757 = vmatpush1.bf16.msra.mxu0 %v1739
        %1758 = vmatprep.subr.bf16.mxu0 0
        %1759 = vmatpush1.bf16.msra.mxu0 %v1740
        %1760 = vmatprep.subr.bf16.mxu0 0
        %1761 = vmatpush1.bf16.msra.mxu0 %v1741
        %1762 = vmatprep.subr.bf16.mxu0 0
        %1763 = vmatpush1.bf16.msra.mxu0 %v1742
        %1764 = vmatprep.subr.bf16.mxu0 0
        %1765 = vmatpush1.bf16.msra.mxu0 %v1743
        %1766 = vmatprep.subr.bf16.mxu0 0
        %1767 = vmatpush1.bf16.msra.mxu0 %v1744
        %1768 = vmatprep.subr.bf16.mxu0 0
        %1769 = vmatpush1.bf16.msra.mxu0 %v1745
        %1770 = vmatprep.subr.bf16.mxu0 0
        %1771 = vmatpush1.bf16.msra.mxu0 0
        %1772 = vmatprep.subr.bf16.mxu0 0
        %1773 = vmatpush1.bf16.msra.mxu0 0
        %1774 = vmatprep.subr.bf16.mxu0 0
        %1775 = vmatpush1.bf16.msra.mxu0 0
        %1776 = vmatprep.subr.bf16.mxu0 0
        %1777 = vmatpush1.bf16.msra.mxu0 0
        %1778 = vmatprep.subr.bf16.mxu0 0
        %1779 = vmatpush1.bf16.msra.mxu0 0
        %1780 = vmatprep.subr.bf16.mxu0 0
        %1781 = vmatpush1.bf16.msra.mxu0 0
        %1782 = vmatprep.subr.bf16.mxu0 0
        %1783 = vmatpush1.bf16.msra.mxu0 0
        %1784 = vmatprep.subr.bf16.mxu0 0
        %1785 = vmatpush1.bf16.msra.mxu0 0
        %1786 = vmatprep.mubr.bf16.mxu0 0
        %1787 = vmatmul.mubr.bf16.gmra.mrb[0].mxu0 %v1689
        %v1788 = vpop.f32.mrb[0].mxu0
        %v1789 = vadd.f32 0.0, %v1788
        %v1790 = vpop.f32.mrb[0].mxu0
        %v1791 = vpop.f32.mrb[0].mxu0
        %v1792 = vpop.f32.mrb[0].mxu0
        %1793 = vdwg.mxu0
        %v1794 = vadd.f32 %v1113, %v1789
        %v1795 = vld [vmem:[%s9] sm:$0x1]
        %v1797 = vlaneseq
        %v1798 = vshrl.u32 %v1797, 7
        %v1799 = vsub.s32 0, %v1798
        %v1800 = vrot.slane %v1795, %v1799
        %v1802 = vadd.f32 %v1794, %v1800
        %v1803 = vld [vmem:[%s10] sm:$0x1]
        %v1804 = vld [vmem:[%s11] sm:$0x1]
        %1805 = vadd.xlane.f32.xlu0 %v1802
        %v1806 = vpop.xlane.xlu0 %1805
        %v1807 = vrcp.pop 128.0
        %v1808 = vmul.f32 %v1806, %v1807
        %v1809 = vsub.f32 %v1802, %v1808
        %v1810 = vmul.f32 %v1809, %v1809
        %1811 = vadd.xlane.f32.xlu0 %v1810
        %v1812 = vpop.xlane.xlu0 %1811
        %v1813 = vmul.f32 %v1812, %v1807
        %v1814 = vadd.f32 %v1813, 1e-05
        %v1815 = vrsqrt.pop %v1814
        %v1816 = vmul.f32 %v1809, %v1815
        %v1818 = vlaneseq
        %v1819 = vshrl.u32 %v1818, 7
        %v1820 = vsub.s32 0, %v1819
        %v1821 = vrot.slane %v1803, %v1820
        %v1823 = vmul.f32 %v1816, %v1821
        %v1825 = vlaneseq
        %v1826 = vshrl.u32 %v1825, 7
        %v1827 = vsub.s32 0, %v1826
        %v1828 = vrot.slane %v1804, %v1827
        %v1830 = vadd.f32 %v1823, %v1828
        %v1831 = vpack.c.bf16 %v1830, %v1830
        %v1832 = vld [vmem:[%s12] sm:$0xff]
        %v1833 = vld [vmem:[%s12 + $0x8] sm:$0xff]
        %v1834 = vld [vmem:[%s12 + $0x10] sm:$0xff]
        %v1835 = vld [vmem:[%s12 + $0x18] sm:$0xff]
        %v1836 = vld [vmem:[%s12 + $0x20] sm:$0xff]
        %v1837 = vld [vmem:[%s12 + $0x28] sm:$0xff]
        %v1838 = vld [vmem:[%s12 + $0x30] sm:$0xff]
        %v1839 = vld [vmem:[%s12 + $0x38] sm:$0xff]
        %v1840 = vld [vmem:[%s12 + $0x40] sm:$0xff]
        %v1841 = vld [vmem:[%s12 + $0x48] sm:$0xff]
        %v1842 = vld [vmem:[%s12 + $0x50] sm:$0xff]
        %v1843 = vld [vmem:[%s12 + $0x58] sm:$0xff]
        %v1844 = vld [vmem:[%s12 + $0x60] sm:$0xff]
        %v1845 = vld [vmem:[%s12 + $0x68] sm:$0xff]
        %v1846 = vld [vmem:[%s12 + $0x70] sm:$0xff]
        %v1847 = vld [vmem:[%s12 + $0x78] sm:$0xff]
        %v1848 = vld [vmem:[%s13] sm:$0x3]
        %v1850 = vlaneseq
        %v1851 = vshrl.u32 %v1850, 7
        %v1852 = vsub.s32 0, %v1851
        %v1853 = vrot.slane %v1848, %v1852
        %v1854 = vlaneseq
        %v1855 = vshrl.u32 %v1854, 7
        %v1856 = vsub.s32 1, %v1855
        %v1857 = vrot.slane %v1848, %v1856
        %v1876 = vunpack.c.l.b16 %v1832
        %v1877 = vunpack.c.h.b16 %v1832
        %v1878 = vunpack.c.l.b16 %v1833
        %v1879 = vunpack.c.h.b16 %v1833
        %v1880 = vunpack.c.l.b16 %v1834
        %v1881 = vunpack.c.h.b16 %v1834
        %v1882 = vunpack.c.l.b16 %v1835
        %v1883 = vunpack.c.h.b16 %v1835
        %v1884 = vunpack.c.l.b16 %v1836
        %v1885 = vunpack.c.h.b16 %v1836
        %v1886 = vunpack.c.l.b16 %v1837
        %v1887 = vunpack.c.h.b16 %v1837
        %v1888 = vunpack.c.l.b16 %v1838
        %v1889 = vunpack.c.h.b16 %v1838
        %v1890 = vunpack.c.l.b16 %v1839
        %v1891 = vunpack.c.h.b16 %v1839
        %v1892 = vunpack.c.l.b16 %v1840
        %v1893 = vunpack.c.h.b16 %v1840
        %v1894 = vunpack.c.l.b16 %v1841
        %v1895 = vunpack.c.h.b16 %v1841
        %v1896 = vunpack.c.l.b16 %v1842
        %v1897 = vunpack.c.h.b16 %v1842
        %v1898 = vunpack.c.l.b16 %v1843
        %v1899 = vunpack.c.h.b16 %v1843
        %v1900 = vunpack.c.l.b16 %v1844
        %v1901 = vunpack.c.h.b16 %v1844
        %v1902 = vunpack.c.l.b16 %v1845
        %v1903 = vunpack.c.h.b16 %v1845
        %v1904 = vunpack.c.l.b16 %v1846
        %v1905 = vunpack.c.h.b16 %v1846
        %v1906 = vunpack.c.l.b16 %v1847
        %v1907 = vunpack.c.h.b16 %v1847
        %v1908 = vpack.c.b16 %v1878, %v1876
        %v1909 = vpack.c.b16 %v1879, %v1877
        %v1910 = vpack.c.b16 %v1882, %v1880
        %v1911 = vpack.c.b16 %v1883, %v1881
        %v1912 = vpack.c.b16 %v1886, %v1884
        %v1913 = vpack.c.b16 %v1887, %v1885
        %v1914 = vpack.c.b16 %v1890, %v1888
        %v1915 = vpack.c.b16 %v1891, %v1889
        %v1916 = vpack.c.b16 %v1894, %v1892
        %v1917 = vpack.c.b16 %v1895, %v1893
        %v1918 = vpack.c.b16 %v1898, %v1896
        %v1919 = vpack.c.b16 %v1899, %v1897
        %v1920 = vpack.c.b16 %v1902, %v1900
        %v1921 = vpack.c.b16 %v1903, %v1901
        %v1922 = vpack.c.b16 %v1906, %v1904
        %v1923 = vpack.c.b16 %v1907, %v1905
        %1940 = vmatprep.subr.bf16.mxu0 %v1909
        %1941 = vmatpush1.bf16.msra.mxu0 %v1908
        %1942 = vmatprep.subr.bf16.mxu0 %v1911
        %1943 = vmatpush1.bf16.msra.mxu0 %v1910
        %1944 = vmatprep.subr.bf16.mxu0 %v1913
        %1945 = vmatpush1.bf16.msra.mxu0 %v1912
        %1946 = vmatprep.subr.bf16.mxu0 %v1915
        %1947 = vmatpush1.bf16.msra.mxu0 %v1914
        %1948 = vmatprep.subr.bf16.mxu0 %v1917
        %1949 = vmatpush1.bf16.msra.mxu0 %v1916
        %1950 = vmatprep.subr.bf16.mxu0 %v1919
        %1951 = vmatpush1.bf16.msra.mxu0 %v1918
        %1952 = vmatprep.subr.bf16.mxu0 %v1921
        %1953 = vmatpush1.bf16.msra.mxu0 %v1920
        %1954 = vmatprep.subr.bf16.mxu0 %v1923
        %1955 = vmatpush1.bf16.msra.mxu0 %v1922
        %1956 = vmatprep.subr.bf16.mxu0 0
        %1957 = vmatpush1.bf16.msra.mxu0 0
        %1958 = vmatprep.subr.bf16.mxu0 0
        %1959 = vmatpush1.bf16.msra.mxu0 0
        %1960 = vmatprep.subr.bf16.mxu0 0
        %1961 = vmatpush1.bf16.msra.mxu0 0
        %1962 = vmatprep.subr.bf16.mxu0 0
        %1963 = vmatpush1.bf16.msra.mxu0 0
        %1964 = vmatprep.subr.bf16.mxu0 0
        %1965 = vmatpush1.bf16.msra.mxu0 0
        %1966 = vmatprep.subr.bf16.mxu0 0
        %1967 = vmatpush1.bf16.msra.mxu0 0
        %1968 = vmatprep.subr.bf16.mxu0 0
        %1969 = vmatpush1.bf16.msra.mxu0 0
        %1970 = vmatprep.subr.bf16.mxu0 0
        %1971 = vmatpush1.bf16.msra.mxu0 0
        %1972 = vmatprep.mubr.bf16.mxu0 0
        %1973 = vmatmul.mubr.bf16.gmra.mrb[0].mxu0 %v1831
        %v1974 = vpop.f32.mrb[0].mxu0
        %v1975 = vadd.f32 %v1853, %v1974
        %v1976 = vpop.f32.mrb[0].mxu0
        %v1977 = vadd.f32 %v1857, %v1976
        %v1978 = vpop.f32.mrb[0].mxu0
        %v1979 = vpop.f32.mrb[0].mxu0
        %1980 = vdwg.mxu0
        %v1981 = vmax.f32 %v1975, 0.0
        %v1982 = vmax.f32 %v1977, 0.0
        %v1983 = vpack.c.bf16 %v1981, %v1981
        %v1984 = vpack.c.bf16 %v1982, %v1982
        %v1985 = vld [vmem:[#allocation12] sm:$0xf]
        %v1986 = vld [vmem:[#allocation12 + $0x4] sm:$0xf]
        %v1987 = vld [vmem:[#allocation12 + $0x8] sm:$0xf]
        %v1988 = vld [vmem:[#allocation12 + $0xc] sm:$0xf]
        %v1989 = vld [vmem:[#allocation12 + $0x10] sm:$0xf]
        %v1990 = vld [vmem:[#allocation12 + $0x14] sm:$0xf]
        %v1991 = vld [vmem:[#allocation12 + $0x18] sm:$0xf]
        %v1992 = vld [vmem:[#allocation12 + $0x1c] sm:$0xf]
        %v1993 = vld [vmem:[#allocation12 + $0x20] sm:$0xf]
        %v1994 = vld [vmem:[#allocation12 + $0x24] sm:$0xf]
        %v1995 = vld [vmem:[#allocation12 + $0x28] sm:$0xf]
        %v1996 = vld [vmem:[#allocation12 + $0x2c] sm:$0xf]
        %v1997 = vld [vmem:[#allocation12 + $0x30] sm:$0xf]
        %v1998 = vld [vmem:[#allocation12 + $0x34] sm:$0xf]
        %v1999 = vld [vmem:[#allocation12 + $0x38] sm:$0xf]
        %v2000 = vld [vmem:[#allocation12 + $0x3c] sm:$0xf]
        %v2001 = vld [vmem:[#allocation12 + $0x40] sm:$0xf]
        %v2002 = vld [vmem:[#allocation12 + $0x44] sm:$0xf]
        %v2003 = vld [vmem:[#allocation12 + $0x48] sm:$0xf]
        %v2004 = vld [vmem:[#allocation12 + $0x4c] sm:$0xf]
        %v2005 = vld [vmem:[#allocation12 + $0x50] sm:$0xf]
        %v2006 = vld [vmem:[#allocation12 + $0x54] sm:$0xf]
        %v2007 = vld [vmem:[#allocation12 + $0x58] sm:$0xf]
        %v2008 = vld [vmem:[#allocation12 + $0x5c] sm:$0xf]
        %v2009 = vld [vmem:[#allocation12 + $0x60] sm:$0xf]
        %v2010 = vld [vmem:[#allocation12 + $0x64] sm:$0xf]
        %v2011 = vld [vmem:[#allocation12 + $0x68] sm:$0xf]
        %v2012 = vld [vmem:[#allocation12 + $0x6c] sm:$0xf]
        %v2013 = vld [vmem:[#allocation12 + $0x70] sm:$0xf]
        %v2014 = vld [vmem:[#allocation12 + $0x74] sm:$0xf]
        %v2015 = vld [vmem:[#allocation12 + $0x78] sm:$0xf]
        %v2016 = vld [vmem:[#allocation12 + $0x7c] sm:$0xf]
        %v2017 = vld [vmem:[%s15] sm:$0x1]
        %v2019 = vlaneseq
        %v2020 = vshrl.u32 %v2019, 7
        %v2021 = vsub.s32 0, %v2020
        %v2022 = vrot.slane %v2017, %v2021
        %v2056 = vunpack.c.l.b16 %v1985
        %v2057 = vunpack.c.l.b16 %v1986
        %v2058 = vunpack.c.l.b16 %v1987
        %v2059 = vunpack.c.l.b16 %v1988
        %v2060 = vunpack.c.l.b16 %v1989
        %v2061 = vunpack.c.l.b16 %v1990
        %v2062 = vunpack.c.l.b16 %v1991
        %v2063 = vunpack.c.l.b16 %v1992
        %v2064 = vunpack.c.l.b16 %v1993
        %v2065 = vunpack.c.l.b16 %v1994
        %v2066 = vunpack.c.l.b16 %v1995
        %v2067 = vunpack.c.l.b16 %v1996
        %v2068 = vunpack.c.l.b16 %v1997
        %v2069 = vunpack.c.l.b16 %v1998
        %v2070 = vunpack.c.l.b16 %v1999
        %v2071 = vunpack.c.l.b16 %v2000
        %v2072 = vunpack.c.l.b16 %v2001
        %v2073 = vunpack.c.l.b16 %v2002
        %v2074 = vunpack.c.l.b16 %v2003
        %v2075 = vunpack.c.l.b16 %v2004
        %v2076 = vunpack.c.l.b16 %v2005
        %v2077 = vunpack.c.l.b16 %v2006
        %v2078 = vunpack.c.l.b16 %v2007
        %v2079 = vunpack.c.l.b16 %v2008
        %v2080 = vunpack.c.l.b16 %v2009
        %v2081 = vunpack.c.l.b16 %v2010
        %v2082 = vunpack.c.l.b16 %v2011
        %v2083 = vunpack.c.l.b16 %v2012
        %v2084 = vunpack.c.l.b16 %v2013
        %v2085 = vunpack.c.l.b16 %v2014
        %v2086 = vunpack.c.l.b16 %v2015
        %v2087 = vunpack.c.l.b16 %v2016
        %v2088 = vpack.c.b16 %v2057, %v2056
        %v2089 = vpack.c.b16 %v2059, %v2058
        %v2090 = vpack.c.b16 %v2061, %v2060
        %v2091 = vpack.c.b16 %v2063, %v2062
        %v2092 = vpack.c.b16 %v2065, %v2064
        %v2093 = vpack.c.b16 %v2067, %v2066
        %v2094 = vpack.c.b16 %v2069, %v2068
        %v2095 = vpack.c.b16 %v2071, %v2070
        %v2096 = vpack.c.b16 %v2073, %v2072
        %v2097 = vpack.c.b16 %v2075, %v2074
        %v2098 = vpack.c.b16 %v2077, %v2076
        %v2099 = vpack.c.b16 %v2079, %v2078
        %v2100 = vpack.c.b16 %v2081, %v2080
        %v2101 = vpack.c.b16 %v2083, %v2082
        %v2102 = vpack.c.b16 %v2085, %v2084
        %v2103 = vpack.c.b16 %v2087, %v2086
        %2120 = vmatprep.subr.bf16.mxu0 0
        %2121 = vmatpush1.bf16.msra.mxu0 %v2088
        %2122 = vmatprep.subr.bf16.mxu0 0
        %2123 = vmatpush1.bf16.msra.mxu0 %v2089
        %2124 = vmatprep.subr.bf16.mxu0 0
        %2125 = vmatpush1.bf16.msra.mxu0 %v2090
        %2126 = vmatprep.subr.bf16.mxu0 0
        %2127 = vmatpush1.bf16.msra.mxu0 %v2091
        %2128 = vmatprep.subr.bf16.mxu0 0
        %2129 = vmatpush1.bf16.msra.mxu0 %v2092
        %2130 = vmatprep.subr.bf16.mxu0 0
        %2131 = vmatpush1.bf16.msra.mxu0 %v2093
        %2132 = vmatprep.subr.bf16.mxu0 0
        %2133 = vmatpush1.bf16.msra.mxu0 %v2094
        %2134 = vmatprep.subr.bf16.mxu0 0
        %2135 = vmatpush1.bf16.msra.mxu0 %v2095
        %2136 = vmatprep.subr.bf16.mxu0 0
        %2137 = vmatpush1.bf16.msra.mxu0 %v2096
        %2138 = vmatprep.subr.bf16.mxu0 0
        %2139 = vmatpush1.bf16.msra.mxu0 %v2097
        %2140 = vmatprep.subr.bf16.mxu0 0
        %2141 = vmatpush1.bf16.msra.mxu0 %v2098
        %2142 = vmatprep.subr.bf16.mxu0 0
        %2143 = vmatpush1.bf16.msra.mxu0 %v2099
        %2144 = vmatprep.subr.bf16.mxu0 0
        %2145 = vmatpush1.bf16.msra.mxu0 %v2100
        %2146 = vmatprep.subr.bf16.mxu0 0
        %2147 = vmatpush1.bf16.msra.mxu0 %v2101
        %2148 = vmatprep.subr.bf16.mxu0 0
        %2149 = vmatpush1.bf16.msra.mxu0 %v2102
        %2150 = vmatprep.subr.bf16.mxu0 0
        %2151 = vmatpush1.bf16.msra.mxu0 %v2103
        %2152 = vmatprep.mubr.bf16.mxu0 %v1984
        %2153 = vmatmul.mubr.bf16.gmra.mrb[0].mxu0 %v1983
        %v2154 = vpop.f32.mrb[0].mxu0
        %v2155 = vadd.f32 %v2022, %v2154
        %v2156 = vpop.f32.mrb[0].mxu0
        %v2157 = vpop.f32.mrb[0].mxu0
        %v2158 = vpop.f32.mrb[0].mxu0
        %2159 = vdwg.mxu0
        %v2160 = vadd.f32 %v1830, %v2155
        %v2161 = vld [vmem:[%s16] sm:$0x1]
        %v2162 = vld [vmem:[%s17] sm:$0x1]
        %2163 = vadd.xlane.f32.xlu0 %v2160
        %v2164 = vpop.xlane.xlu0 %2163
        %v2165 = vmul.f32 %v2164, %v1807
        %v2166 = vsub.f32 %v2160, %v2165
        %v2167 = vmul.f32 %v2166, %v2166
        %2168 = vadd.xlane.f32.xlu0 %v2167
        %v2169 = vpop.xlane.xlu0 %2168
        %v2170 = vmul.f32 %v2169, %v1807
        %v2171 = vadd.f32 %v2170, 1e-05
        %v2172 = vrsqrt.pop %v2171
        %v2173 = vmul.f32 %v2166, %v2172
        %v2175 = vlaneseq
        %v2176 = vshrl.u32 %v2175, 7
        %v2177 = vsub.s32 0, %v2176
        %v2178 = vrot.slane %v2161, %v2177
        %v2180 = vmul.f32 %v2173, %v2178
        %v2182 = vlaneseq
        %v2183 = vshrl.u32 %v2182, 7
        %v2184 = vsub.s32 0, %v2183
        %v2185 = vrot.slane %v2162, %v2184
        %v2187 = vadd.f32 %v2180, %v2185
        %2188 = vst [vmem:[%s699] sm:$0xff] %v2187
        %s2189 = sand.u32 %s450, 1
        %s2190 = scalar_lea.sflag [#allocation6], %s2189
        %s2191 = sand.u32 %s450, 1
        %s2192 = smul.addr %s2191, 8
        %s2193 = scalar_lea.vmem [#allocation13], %s2192
        %s2194 = sand.u32 %s478, 1
        %s2195 = scalar_lea.sflag [#allocation15], %s2194
        %s2196 = sand.u32 %s478, 1
        %s2197 = smul.addr %s2196, 8
        %s2198 = scalar_lea.vmem [#allocation14], %s2197
        // Predicated region
        $region117: #{tpu_custom_call.1} parent=91 // pred_check
          %p2199 = pneg %p460
        $region118: #{tpu_custom_call.1} parent=91 // pred_check_branch
          %2201 = sbr.rel (%p2199) target = $region120
        $region119: #{tpu_custom_call.1} parent=91 // pred_region
          %s2203 = ssub.s32 128, 128
          %2204 = vsyncadd %s2190, %s2203
          %s2205 = smul.addr %s44, 2
          %s2206 = sadd.s32 %s45, %s2205
          %s2207 = smul.addr %s2206, 128
          %s2208 = scalar_lea.hbm %s18, %s2207
          %s2210 = sshll.u32 %s2193, 4
          %s2211 = int_to_ptr.vmem [resolvable:$true] %s2210
          %2213 = dma.vmem_to_hbm [thread:$0]  %s2211, 128, %s2208, %s2190
        $region120: #{tpu_custom_call.1} parent=91 // pred_fallthru
          _
        // Predicated region
        $region121: #{tpu_custom_call.1} parent=91 // pred_check
          %p2214 = pneg %p488
        $region122: #{tpu_custom_call.1} parent=91 // pred_check_branch
          %2216 = sbr.rel (%p2214) target = $region124
        $region123: #{tpu_custom_call.1} parent=91 // pred_region
          %s2218 = ssub.s32 128, 128
          %2219 = vsyncadd %s2195, %s2218
          %s2220 = smul.addr %s44, 2
          %s2221 = sadd.s32 %s45, %s2220
          %s2222 = smul.addr %s2221, 128
          %s2223 = scalar_lea.hbm %s19, %s2222
          %s2225 = sshll.u32 %s2198, 4
          %s2226 = int_to_ptr.vmem [resolvable:$true] %s2225
          %2228 = dma.vmem_to_hbm [thread:$0]  %s2226, 128, %s2223, %s2195
        $region124: #{tpu_custom_call.1} parent=91 // pred_fallthru
          _
      $region92: #{tpu_custom_call.1} parent=5 // pred_fallthru
        _
      %p2229 = scmp.le.s32.totalorder 2, %s35
      // Predicated region
      $region125: #{tpu_custom_call.1} parent=5 // pred_check
        %p2230 = pneg %p2229
      $region126: #{tpu_custom_call.1} parent=5 // pred_check_branch
        %2232 = sbr.rel (%p2230) target = $region128
      $region127: #{tpu_custom_call.1} parent=5 // pred_region
        %s2233 = ssub.s32 %s35, 2
        // Predicated region
        $region129: #{tpu_custom_call.1} parent=127 // pred_check
          %p2234 = pneg %p466
        $region130: #{tpu_custom_call.1} parent=127 // pred_check_branch
          %2236 = sbr.rel (%p2234) target = $region132
        $region131: #{tpu_custom_call.1} parent=127 // pred_region
          %s2237 = sand.u32 %s451, 1
          %s2238 = scalar_lea.sflag [#allocation6], %s2237
          %s2239 = sand.u32 %s451, 1
          %s2240 = smul.addr %s2239, 8
          %s2241 = scalar_lea.vmem [#allocation13], %s2240
          %2242 = dma.done %s2238, 128
        $region132: #{tpu_custom_call.1} parent=127 // pred_fallthru
          _
        // Predicated region
        $region133: #{tpu_custom_call.1} parent=127 // pred_check
          %p2243 = pneg %p494
        $region134: #{tpu_custom_call.1} parent=127 // pred_check_branch
          %2245 = sbr.rel (%p2243) target = $region136
        $region135: #{tpu_custom_call.1} parent=127 // pred_region
          %s2246 = sand.u32 %s479, 1
          %s2247 = scalar_lea.sflag [#allocation15], %s2246
          %s2248 = sand.u32 %s479, 1
          %s2249 = smul.addr %s2248, 8
          %s2250 = scalar_lea.vmem [#allocation14], %s2249
          %2251 = dma.done %s2247, 128
        $region136: #{tpu_custom_call.1} parent=127 // pred_fallthru
          _
      $region128: #{tpu_custom_call.1} parent=5 // pred_fallthru
        _
    $region6: #{tpu_custom_call.1} parent=1 // loop_footer
      %s39 = sadd.s32 1, %s35
    $region7: #{tpu_custom_call.1} parent=1 // loop_footer_branch
      %34 = sbr.rel target = $region3
    $region8: #{tpu_custom_call.1} parent=1 // loop_exit
      _
    %2252 = vsyncpa [#allocation5], 1
    %s2253 = scalar_lea.sflag [#allocation5], 1
    %2254 = vsyncpa %s2253, 1
    %2255 = vsyncpa [#allocation8], 1
    %2256 = vsyncpa [#allocation11], 1
    %2257 = vsyncpa [#allocation6], 1
    %s2258 = scalar_lea.sflag [#allocation6], 1
    %2259 = vsyncpa %s2258, 1
    %2260 = vsyncpa [#allocation15], 1
    %s2261 = scalar_lea.sflag [#allocation15], 1
    %2262 = vsyncpa %s2261, 1

</llo_original>
